<compile_context>
chip_gen: v7x
topology: tpu7x:2x2x1
jax: 0.10.0
libtpu: 0.0.40
codegen_flags: <defaults>
</compile_context>

<pallas_src>
import math
import jax
import jax.numpy as jnp
from jax.experimental import pallas as pl
from jax.experimental.pallas import tpu as pltpu


def _round_up(x, m):
    return ((x + m - 1) // m) * m


# --------------------------------------------------------------------------
# Fused Pallas kernel: embedding(one-hot matmul) + wavefront LSTM + decoder
# --------------------------------------------------------------------------
def _make_fused_kernel(n_layers, T, Bp, H, Vi):
    """Builds the fused kernel body for fixed (n_layers, T, Bp, H, vocab)."""
    TB = T * Bp
    G = 4 * H

    def kernel(*refs):
        tok_ref = refs[0]                             # (TB, 1)  int32, time-major
        layer_refs = refs[1:1 + 3 * n_layers]         # per layer: w_in, w_hh, bias
        w_dec_ref = refs[1 + 3 * n_layers]            # (H, Vp)  bf16 (lane-padded)
        b_dec_ref = refs[2 + 3 * n_layers]            # (1, Vp)  f32
        out_ref = refs[3 + 3 * n_layers]              # (TB, Vp) f32
        seq_scr = refs[4 + 3 * n_layers]              # (TB, H)  bf16 VMEM scratch

        # ---- Fused embedding gather + hoisted layer-0 input projection ----
        # one_hot(tokens) @ (embedding @ W_ih0^T) + b0 : one MXU matmul, off the
        # serial recurrence path.
        lane_ids = jax.lax.broadcasted_iota(jnp.int32, (TB, Vi), 1)
        one_hot = jnp.where(lane_ids == tok_ref[...], 1.0, 0.0).astype(jnp.bfloat16)
        gates0 = (jnp.dot(one_hot, layer_refs[0][...],
                          preferred_element_type=jnp.float32)
                  + layer_refs[2][...])               # (TB, 4H) f32

        # Layers > 0: weights + hoisted broadcasted biases (no per-step
        # broadcast_in_dim inside the loop).
        wih = [None] + [layer_refs[3 * l][...] for l in range(1, n_layers)]
        whh = [layer_refs[3 * l + 1][...] for l in range(n_layers)]
        biases = [None] + [jnp.broadcast_to(layer_refs[3 * l + 2][...], (Bp, G))
                           for l in range(1, n_layers)]

        h = [jnp.zeros((Bp, H), jnp.float32) for _ in range(n_layers)]
        c = [jnp.zeros((Bp, H), jnp.float32) for _ in range(n_layers)]
        h_prev_diag = [None] * n_layers               # per-layer bf16 output of prev diagonal

        # ---- Wavefront over (layer, time): diagonal d handles layer l at ----
        # ---- step t = d - l; the per-diagonal updates are independent.   ----
        for d in range(T + n_layers - 1):
            h_this_diag = [None] * n_layers
            for l in range(n_layers):
                t = d - l
                if not (0 <= t < T):
                    continue
                if l == 0:
                    g = gates0[t * Bp:(t + 1) * Bp, :] + jnp.dot(
                        h[0].astype(jnp.bfloat16), whh[0],
                        preferred_element_type=jnp.float32)
                else:
                    # Input is layer l-1's output at step t, computed in the
                    # previous diagonal -> both matmuls independent of l=0's.
                    g = (jnp.dot(h_prev_diag[l - 1], wih[l],
                                 preferred_element_type=jnp.float32)
                         + jnp.dot(h[l].astype(jnp.bfloat16), whh[l],
                                   preferred_element_type=jnp.float32)
                         + biases[l])
                # PyTorch gate order [i, f, g, o]; elementwise kept in f32.
                # TODO(synk): replace the four 32-lane slices with a full-vreg
                # sigmoid/tanh + pltpu.roll combine (XLU slot) if this chain
                # shows up as the bottleneck in the bundle dump.
                i_g = jax.nn.sigmoid(g[:, 0 * H:1 * H])
                f_g = jax.nn.sigmoid(g[:, 1 * H:2 * H])
                g_g = jnp.tanh(g[:, 2 * H:3 * H])
                o_g = jax.nn.sigmoid(g[:, 3 * H:4 * H])
                c[l] = f_g * c[l] + i_g * g_g
                h[l] = o_g * jnp.tanh(c[l])
                h_bf = h[l].astype(jnp.bfloat16)
                h_this_diag[l] = h_bf
                if l == n_layers - 1:
                    # Sublane-aligned (Bp multiple of 8) VMEM-resident store.
                    seq_scr[pl.ds(t * Bp, Bp), :] = h_bf
            h_prev_diag = h_this_diag

        # ---- Decoder epilogue: lane-dense (Vp multiple of 128) store. ----
        out_ref[...] = (jnp.dot(seq_scr[...], w_dec_ref[...],
                                preferred_element_type=jnp.float32)
                        + b_dec_ref[...])

    return kernel


# --------------------------------------------------------------------------
# One-time weight packing (outside the jitted forward)
# --------------------------------------------------------------------------
def pack_params(params, n_layers):
    """Transpose / cast / fuse weights once at init time."""
    H = params["w_hh_0"].shape[1]
    V = params["w_dec"].shape[0]
    Vp = _round_up(V, 128)

    packed = {}
    # Layer 0: fold the embedding table into the input projection.
    packed["w_in_0"] = (params["embedding"] @ params["w_ih_0"].T).astype(jnp.bfloat16)
    packed["w_hh_0"] = params["w_hh_0"].T.astype(jnp.bfloat16)
    packed["bias_0"] = (params["b_ih_0"] + params["b_hh_0"]
                        ).reshape(1, 4 * H).astype(jnp.float32)
    for l in range(1, n_layers):
        packed[f"w_in_{l}"] = params[f"w_ih_{l}"].T.astype(jnp.bfloat16)
        packed[f"w_hh_{l}"] = params[f"w_hh_{l}"].T.astype(jnp.bfloat16)
        packed[f"bias_{l}"] = (params[f"b_ih_{l}"] + params[f"b_hh_{l}"]
                               ).reshape(1, 4 * H).astype(jnp.float32)
    # Decoder, lane-padded so the kernel's output store is unmasked.
    w_dec_p = jnp.zeros((H, Vp), jnp.float32).at[:, :V].set(params["w_dec"].T)
    b_dec_p = jnp.zeros((1, Vp), jnp.float32).at[0, :V].set(params["b_dec"])
    packed["w_dec"] = w_dec_p.astype(jnp.bfloat16)
    packed["b_dec"] = b_dec_p
    return packed


# --------------------------------------------------------------------------
# Forward wrapper
# --------------------------------------------------------------------------
def next_character_lstm_forward(tokens, packed, n_layers, output_size):
    """tokens: (B, T) int32 -> logits (B, output_size, T) float32."""
    B, T = tokens.shape
    Vi = packed["w_in_0"].shape[0]                    # vocab (input_size)
    H = packed["w_hh_0"].shape[0]
    Vp = packed["w_dec"].shape[1]
    Bp = max(8, _round_up(B, 8))                      # pad batch to a sublane tile
    TB = T * Bp

    # Time-major tokens, batch padded with token 0 (padded rows sliced off below).
    tok_tm = jnp.pad(jnp.transpose(tokens), ((0, 0), (0, Bp - B)))
    tok_flat = tok_tm.reshape(TB, 1).astype(jnp.int32)

    args = [tok_flat]
    in_specs = [pl.BlockSpec((TB, 1), lambda i: (0, 0))]
    for l in range(n_layers):
        w_in = packed[f"w_in_{l}"]
        args += [w_in, packed[f"w_hh_{l}"], packed[f"bias_{l}"]]
        in_specs += [
            pl.BlockSpec(w_in.shape, lambda i: (0, 0)),
            pl.BlockSpec((H, 4 * H), lambda i: (0, 0)),
            pl.BlockSpec((1, 4 * H), lambda i: (0, 0)),
        ]
    args += [packed["w_dec"], packed["b_dec"]]
    in_specs += [
        pl.BlockSpec((H, Vp), lambda i: (0, 0)),
        pl.BlockSpec((1, Vp), lambda i: (0, 0)),
    ]

    logits_flat = pl.pallas_call(
        _make_fused_kernel(n_layers, T, Bp, H, Vi),
        out_shape=jax.ShapeDtypeStruct((TB, Vp), jnp.float32),
        grid_spec=pltpu.PrefetchScalarGridSpec(
            num_scalar_prefetch=0,
            grid=(1,),                                # recurrence is serial inside
            in_specs=in_specs,
            out_specs=pl.BlockSpec((TB, Vp), lambda i: (0, 0)),
            scratch_shapes=[pltpu.VMEM((TB, H), jnp.bfloat16)],
        ),
        compiler_params=pltpu.CompilerParams(
            dimension_semantics=("arbitrary",)),
    )(*args)

    # TODO(synk): for larger T*B/H, chunk gates0/seq over an 'arbitrary' grid axis
    # (carrying h/c in scratch), set vmem_limit_bytes for v7x's 64 MiB VMEM, and
    # add a batch-'parallel' axis to use the second v7x TensorCore.

    logits = logits_flat.reshape(T, Bp, Vp)[:, :B, :output_size]  # drop padding
    return jnp.transpose(logits, (1, 2, 0))                       # (B, V, T)


# --------------------------------------------------------------------------
# Pure-JAX reference (f32) for numerical sanity check
# --------------------------------------------------------------------------
def reference_forward(tokens, params, n_layers, hidden_size):
    x = params["embedding"][tokens]                   # (B, T, E)
    B = x.shape[0]
    for layer in range(n_layers):
        w_ih = params[f"w_ih_{layer}"]
        w_hh = params[f"w_hh_{layer}"]
        bias = params[f"b_ih_{layer}"] + params[f"b_hh_{layer}"]

        def step(carry, x_t, w_ih=w_ih, w_hh=w_hh, bias=bias):
            h, c = carry
            gates = x_t @ w_ih.T + h @ w_hh.T + bias
            i_g, f_g, g_g, o_g = jnp.split(gates, 4, axis=-1)
            i_g = jax.nn.sigmoid(i_g)
            f_g = jax.nn.sigmoid(f_g)
            g_g = jnp.tanh(g_g)
            o_g = jax.nn.sigmoid(o_g)
            c = f_g * c + i_g * g_g
            h = o_g * jnp.tanh(c)
            return (h, c), h

        h0 = jnp.zeros((B, hidden_size), jnp.float32)
        c0 = jnp.zeros((B, hidden_size), jnp.float32)
        _, out = jax.lax.scan(step, (h0, c0), jnp.transpose(x, (1, 0, 2)))
        x = jnp.transpose(out, (1, 0, 2))             # (B, T, H)
    logits = x @ params["w_dec"].T + params["b_dec"]
    return jnp.transpose(logits, (0, 2, 1))


# --------------------------------------------------------------------------
# Deterministic parameter init (PyTorch-shaped tensors)
# --------------------------------------------------------------------------
def init_params(key, input_size, embed_size, hidden_size, output_size, n_layers):
    params = {}
    keys = jax.random.split(key, 4 + 4 * n_layers)
    k_iter = iter(keys)

    # nn.Embedding: N(0, 1)
    params["embedding"] = jax.random.normal(
        next(k_iter), (input_size, embed_size), jnp.float32)

    # nn.LSTM: U(-1/sqrt(H), 1/sqrt(H))
    stdv = 1.0 / math.sqrt(hidden_size)
    for layer in range(n_layers):
        d_in = embed_size if layer == 0 else hidden_size
        params[f"w_ih_{layer}"] = jax.random.uniform(
            next(k_iter), (4 * hidden_size, d_in), jnp.float32, -stdv, stdv)
        params[f"w_hh_{layer}"] = jax.random.uniform(
            next(k_iter), (4 * hidden_size, hidden_size), jnp.float32, -stdv, stdv)
        params[f"b_ih_{layer}"] = jax.random.uniform(
            next(k_iter), (4 * hidden_size,), jnp.float32, -stdv, stdv)
        params[f"b_hh_{layer}"] = jax.random.uniform(
            next(k_iter), (4 * hidden_size,), jnp.float32, -stdv, stdv)

    # nn.Linear: U(-1/sqrt(H), 1/sqrt(H))
    bound = 1.0 / math.sqrt(hidden_size)
    params["w_dec"] = jax.random.uniform(
        next(k_iter), (output_size, hidden_size), jnp.float32, -bound, bound)
    params["b_dec"] = jax.random.uniform(
        next(k_iter), (output_size,), jnp.float32, -bound, bound)
    return params


# --------------------------------------------------------------------------
if __name__ == "__main__":
    INPUT_SIZE = 16    # vocab
    EMBED_SIZE = 32
    HIDDEN_SIZE = 32
    OUTPUT_SIZE = 16
    N_LAYERS = 2
    BATCH = 2
    SEQ = 8

    key = jax.random.PRNGKey(0)
    k_params, k_tokens = jax.random.split(key)

    params = init_params(k_params, INPUT_SIZE, EMBED_SIZE, HIDDEN_SIZE,
                         OUTPUT_SIZE, N_LAYERS)
    tokens = jax.random.randint(k_tokens, (BATCH, SEQ), 0, INPUT_SIZE,
                                dtype=jnp.int32)

    packed = pack_params(params, N_LAYERS)            # one-time pre-packing

    fwd = jax.jit(lambda t, p: next_character_lstm_forward(
        t, p, N_LAYERS, OUTPUT_SIZE))
    out = jax.block_until_ready(fwd(tokens, packed))

    assert out.shape == (BATCH, OUTPUT_SIZE, SEQ), out.shape
    assert out.dtype == jnp.float32

    ref = jax.block_until_ready(
        reference_forward(tokens, params, N_LAYERS, HIDDEN_SIZE))
    # bf16 MXU operands with f32 accumulation: 2e-2 absorbs the rounding.
    max_err = float(jnp.max(jnp.abs(out - ref)))
    assert max_err < 2e-2, f"max abs error too large: {max_err}"

    print("KERNEL_OK")
</pallas_src>

<mosaic_0001>
module attributes {stable_mosaic.version = 11 : i64} {
  func.func @kernel(%arg0: i32, %arg1: memref<64x1xi32, #tpu.memory_space<vmem>>, %arg2: memref<16x128xbf16, #tpu.memory_space<vmem>>, %arg3: memref<32x128xbf16, #tpu.memory_space<vmem>>, %arg4: memref<1x128xf32, #tpu.memory_space<vmem>>, %arg5: memref<32x128xbf16, #tpu.memory_space<vmem>>, %arg6: memref<32x128xbf16, #tpu.memory_space<vmem>>, %arg7: memref<1x128xf32, #tpu.memory_space<vmem>>, %arg8: memref<32x128xbf16, #tpu.memory_space<vmem>>, %arg9: memref<1x128xf32, #tpu.memory_space<vmem>>, %arg10: memref<64x128xf32, #tpu.memory_space<vmem>>, %arg11: memref<64x32xbf16, #tpu.memory_space<vmem>>) attributes {dimension_semantics = [#tpu.dimension_semantics<arbitrary>], iteration_bounds = array<i64: 1>, scalar_prefetch = 0 : i64, scratch_operands = 1 : i64, tpu.core_type = #tpu.core_type<tc>, window_params = [{pipeline_mode = #tpu.pipeline_mode<synchronous>, transform_indices = @transform_0, window_bounds = array<i64: 64, 1>}, {pipeline_mode = #tpu.pipeline_mode<synchronous>, transform_indices = @transform_1, window_bounds = array<i64: 16, 128>}, {pipeline_mode = #tpu.pipeline_mode<synchronous>, transform_indices = @transform_2, window_bounds = array<i64: 32, 128>}, {pipeline_mode = #tpu.pipeline_mode<synchronous>, transform_indices = @transform_3, window_bounds = array<i64: 1, 128>}, {pipeline_mode = #tpu.pipeline_mode<synchronous>, transform_indices = @transform_4, window_bounds = array<i64: 32, 128>}, {pipeline_mode = #tpu.pipeline_mode<synchronous>, transform_indices = @transform_5, window_bounds = array<i64: 32, 128>}, {pipeline_mode = #tpu.pipeline_mode<synchronous>, transform_indices = @transform_6, window_bounds = array<i64: 1, 128>}, {pipeline_mode = #tpu.pipeline_mode<synchronous>, transform_indices = @transform_7, window_bounds = array<i64: 32, 128>}, {pipeline_mode = #tpu.pipeline_mode<synchronous>, transform_indices = @transform_8, window_bounds = array<i64: 1, 128>}, {pipeline_mode = #tpu.pipeline_mode<synchronous>, transform_indices = @transform_9, window_bounds = array<i64: 64, 128>}]} {
    %0 = tpu.iota {dimensions = array<i32: 1>} : vector<64x16xi32>
    %c0 = arith.constant 0 : index
    %c0_0 = arith.constant 0 : index
    %1 = vector.load %arg1[%c0, %c0_0] : memref<64x1xi32, #tpu.memory_space<vmem>>, vector<64x1xi32>
    %2 = vector.broadcast %1 : vector<64x1xi32> to vector<64x16xi32>
    %3 = arith.cmpi eq, %0, %2 : vector<64x16xi32>
    %cst = arith.constant 1.000000e+00 : f32
    %cst_1 = arith.constant 0.000000e+00 : f32
    %4 = vector.broadcast %cst : f32 to vector<64x16xf32>
    %5 = vector.broadcast %cst_1 : f32 to vector<64x16xf32>
    %6 = arith.select %3, %4, %5 : vector<64x16xi1>, vector<64x16xf32>
    %7 = arith.truncf %6 : vector<64x16xf32> to vector<64x16xbf16>
    %c0_2 = arith.constant 0 : index
    %c0_3 = arith.constant 0 : index
    %8 = vector.load %arg2[%c0_2, %c0_3] : memref<16x128xbf16, #tpu.memory_space<vmem>>, vector<16x128xbf16>
    %cst_4 = arith.constant dense<0.000000e+00> : vector<64x128xf32>
    %9 = tpu.matmul %7, %8, %cst_4 {dimension_numbers = #tpu.dot_dimension_numbers<[1], [0], [0], [1], [0, 0, 1, 1], [], []>} : vector<64x16xbf16>, vector<16x128xbf16>, vector<64x128xf32> -> vector<64x128xf32>
    %c0_5 = arith.constant 0 : index
    %c0_6 = arith.constant 0 : index
    %10 = vector.load %arg4[%c0_5, %c0_6] : memref<1x128xf32, #tpu.memory_space<vmem>>, vector<1x128xf32>
    %11 = vector.broadcast %10 : vector<1x128xf32> to vector<64x128xf32>
    %12 = arith.addf %9, %11 : vector<64x128xf32>
    %c0_7 = arith.constant 0 : index
    %c0_8 = arith.constant 0 : index
    %13 = vector.load %arg5[%c0_7, %c0_8] : memref<32x128xbf16, #tpu.memory_space<vmem>>, vector<32x128xbf16>
    %c0_9 = arith.constant 0 : index
    %c0_10 = arith.constant 0 : index
    %14 = vector.load %arg3[%c0_9, %c0_10] : memref<32x128xbf16, #tpu.memory_space<vmem>>, vector<32x128xbf16>
    %c0_11 = arith.constant 0 : index
    %c0_12 = arith.constant 0 : index
    %15 = vector.load %arg6[%c0_11, %c0_12] : memref<32x128xbf16, #tpu.memory_space<vmem>>, vector<32x128xbf16>
    %c0_13 = arith.constant 0 : index
    %c0_14 = arith.constant 0 : index
    %16 = vector.load %arg7[%c0_13, %c0_14] : memref<1x128xf32, #tpu.memory_space<vmem>>, vector<1x128xf32>
    %17 = vector.shape_cast %16 : vector<1x128xf32> to vector<1x128xf32>
    %18 = vector.broadcast %17 : vector<1x128xf32> to vector<8x128xf32>
    %cst_15 = arith.constant 0.000000e+00 : f32
    %19 = vector.broadcast %cst_15 : f32 to vector<8x32xf32>
    %cst_16 = arith.constant 0.000000e+00 : f32
    %20 = vector.broadcast %cst_16 : f32 to vector<8x32xf32>
    %cst_17 = arith.constant 0.000000e+00 : f32
    %21 = vector.broadcast %cst_17 : f32 to vector<8x32xf32>
    %cst_18 = arith.constant 0.000000e+00 : f32
    %22 = vector.broadcast %cst_18 : f32 to vector<8x32xf32>
    %23 = vector.extract_strided_slice %12 {offsets = [0, 0], sizes = [8, 128], strides = [1, 1]} : vector<64x128xf32> to vector<8x128xf32>
    %24 = arith.truncf %19 : vector<8x32xf32> to vector<8x32xbf16>
    %cst_19 = arith.constant dense<0.000000e+00> : vector<8x128xf32>
    %25 = tpu.matmul %24, %14, %cst_19 {dimension_numbers = #tpu.dot_dimension_numbers<[1], [0], [0], [1], [0, 0, 1, 1], [], []>} : vector<8x32xbf16>, vector<32x128xbf16>, vector<8x128xf32> -> vector<8x128xf32>
    %26 = arith.addf %23, %25 : vector<8x128xf32>
    %27 = vector.extract_strided_slice %26 {offsets = [0, 0], sizes = [8, 32], strides = [1, 1]} : vector<8x128xf32> to vector<8x32xf32>
    %28 = arith.negf %27 : vector<8x32xf32>
    %29 = math.exp %28 : vector<8x32xf32>
    %cst_20 = arith.constant 1.000000e+00 : f32
    %30 = vector.broadcast %cst_20 : f32 to vector<8x32xf32>
    %31 = arith.addf %30, %29 : vector<8x32xf32>
    %32 = arith.divf %30, %31 : vector<8x32xf32>
    %33 = vector.extract_strided_slice %26 {offsets = [0, 32], sizes = [8, 32], strides = [1, 1]} : vector<8x128xf32> to vector<8x32xf32>
    %34 = arith.negf %33 : vector<8x32xf32>
    %35 = math.exp %34 : vector<8x32xf32>
    %cst_21 = arith.constant 1.000000e+00 : f32
    %36 = vector.broadcast %cst_21 : f32 to vector<8x32xf32>
    %37 = arith.addf %36, %35 : vector<8x32xf32>
    %38 = arith.divf %36, %37 : vector<8x32xf32>
    %39 = vector.extract_strided_slice %26 {offsets = [0, 64], sizes = [8, 32], strides = [1, 1]} : vector<8x128xf32> to vector<8x32xf32>
    %40 = math.tanh %39 : vector<8x32xf32>
    %41 = vector.extract_strided_slice %26 {offsets = [0, 96], sizes = [8, 32], strides = [1, 1]} : vector<8x128xf32> to vector<8x32xf32>
    %42 = arith.negf %41 : vector<8x32xf32>
    %43 = math.exp %42 : vector<8x32xf32>
    %cst_22 = arith.constant 1.000000e+00 : f32
    %44 = vector.broadcast %cst_22 : f32 to vector<8x32xf32>
    %45 = arith.addf %44, %43 : vector<8x32xf32>
    %46 = arith.divf %44, %45 : vector<8x32xf32>
    %47 = arith.mulf %38, %21 : vector<8x32xf32>
    %48 = arith.mulf %32, %40 : vector<8x32xf32>
    %49 = arith.addf %47, %48 : vector<8x32xf32>
    %50 = math.tanh %49 : vector<8x32xf32>
    %51 = arith.mulf %46, %50 : vector<8x32xf32>
    %52 = arith.truncf %51 : vector<8x32xf32> to vector<8x32xbf16>
    %53 = vector.extract_strided_slice %12 {offsets = [8, 0], sizes = [8, 128], strides = [1, 1]} : vector<64x128xf32> to vector<8x128xf32>
    %54 = arith.truncf %51 : vector<8x32xf32> to vector<8x32xbf16>
    %cst_23 = arith.constant dense<0.000000e+00> : vector<8x128xf32>
    %55 = tpu.matmul %54, %14, %cst_23 {dimension_numbers = #tpu.dot_dimension_numbers<[1], [0], [0], [1], [0, 0, 1, 1], [], []>} : vector<8x32xbf16>, vector<32x128xbf16>, vector<8x128xf32> -> vector<8x128xf32>
    %56 = arith.addf %53, %55 : vector<8x128xf32>
    %57 = vector.extract_strided_slice %56 {offsets = [0, 0], sizes = [8, 32], strides = [1, 1]} : vector<8x128xf32> to vector<8x32xf32>
    %58 = arith.negf %57 : vector<8x32xf32>
    %59 = math.exp %58 : vector<8x32xf32>
    %cst_24 = arith.constant 1.000000e+00 : f32
    %60 = vector.broadcast %cst_24 : f32 to vector<8x32xf32>
    %61 = arith.addf %60, %59 : vector<8x32xf32>
    %62 = arith.divf %60, %61 : vector<8x32xf32>
    %63 = vector.extract_strided_slice %56 {offsets = [0, 32], sizes = [8, 32], strides = [1, 1]} : vector<8x128xf32> to vector<8x32xf32>
    %64 = arith.negf %63 : vector<8x32xf32>
    %65 = math.exp %64 : vector<8x32xf32>
    %cst_25 = arith.constant 1.000000e+00 : f32
    %66 = vector.broadcast %cst_25 : f32 to vector<8x32xf32>
    %67 = arith.addf %66, %65 : vector<8x32xf32>
    %68 = arith.divf %66, %67 : vector<8x32xf32>
    %69 = vector.extract_strided_slice %56 {offsets = [0, 64], sizes = [8, 32], strides = [1, 1]} : vector<8x128xf32> to vector<8x32xf32>
    %70 = math.tanh %69 : vector<8x32xf32>
    %71 = vector.extract_strided_slice %56 {offsets = [0, 96], sizes = [8, 32], strides = [1, 1]} : vector<8x128xf32> to vector<8x32xf32>
    %72 = arith.negf %71 : vector<8x32xf32>
    %73 = math.exp %72 : vector<8x32xf32>
    %cst_26 = arith.constant 1.000000e+00 : f32
    %74 = vector.broadcast %cst_26 : f32 to vector<8x32xf32>
    %75 = arith.addf %74, %73 : vector<8x32xf32>
    %76 = arith.divf %74, %75 : vector<8x32xf32>
    %77 = arith.mulf %68, %49 : vector<8x32xf32>
    %78 = arith.mulf %62, %70 : vector<8x32xf32>
    %79 = arith.addf %77, %78 : vector<8x32xf32>
    %80 = math.tanh %79 : vector<8x32xf32>
    %81 = arith.mulf %76, %80 : vector<8x32xf32>
    %82 = arith.truncf %81 : vector<8x32xf32> to vector<8x32xbf16>
    %cst_27 = arith.constant dense<0.000000e+00> : vector<8x128xf32>
    %83 = tpu.matmul %52, %13, %cst_27 {dimension_numbers = #tpu.dot_dimension_numbers<[1], [0], [0], [1], [0, 0, 1, 1], [], []>} : vector<8x32xbf16>, vector<32x128xbf16>, vector<8x128xf32> -> vector<8x128xf32>
    %84 = arith.truncf %20 : vector<8x32xf32> to vector<8x32xbf16>
    %cst_28 = arith.constant dense<0.000000e+00> : vector<8x128xf32>
    %85 = tpu.matmul %84, %15, %cst_28 {dimension_numbers = #tpu.dot_dimension_numbers<[1], [0], [0], [1], [0, 0, 1, 1], [], []>} : vector<8x32xbf16>, vector<32x128xbf16>, vector<8x128xf32> -> vector<8x128xf32>
    %86 = arith.addf %83, %85 : vector<8x128xf32>
    %87 = arith.addf %86, %18 : vector<8x128xf32>
    %88 = vector.extract_strided_slice %87 {offsets = [0, 0], sizes = [8, 32], strides = [1, 1]} : vector<8x128xf32> to vector<8x32xf32>
    %89 = arith.negf %88 : vector<8x32xf32>
    %90 = math.exp %89 : vector<8x32xf32>
    %cst_29 = arith.constant 1.000000e+00 : f32
    %91 = vector.broadcast %cst_29 : f32 to vector<8x32xf32>
    %92 = arith.addf %91, %90 : vector<8x32xf32>
    %93 = arith.divf %91, %92 : vector<8x32xf32>
    %94 = vector.extract_strided_slice %87 {offsets = [0, 32], sizes = [8, 32], strides = [1, 1]} : vector<8x128xf32> to vector<8x32xf32>
    %95 = arith.negf %94 : vector<8x32xf32>
    %96 = math.exp %95 : vector<8x32xf32>
    %cst_30 = arith.constant 1.000000e+00 : f32
    %97 = vector.broadcast %cst_30 : f32 to vector<8x32xf32>
    %98 = arith.addf %97, %96 : vector<8x32xf32>
    %99 = arith.divf %97, %98 : vector<8x32xf32>
    %100 = vector.extract_strided_slice %87 {offsets = [0, 64], sizes = [8, 32], strides = [1, 1]} : vector<8x128xf32> to vector<8x32xf32>
    %101 = math.tanh %100 : vector<8x32xf32>
    %102 = vector.extract_strided_slice %87 {offsets = [0, 96], sizes = [8, 32], strides = [1, 1]} : vector<8x128xf32> to vector<8x32xf32>
    %103 = arith.negf %102 : vector<8x32xf32>
    %104 = math.exp %103 : vector<8x32xf32>
    %cst_31 = arith.constant 1.000000e+00 : f32
    %105 = vector.broadcast %cst_31 : f32 to vector<8x32xf32>
    %106 = arith.addf %105, %104 : vector<8x32xf32>
    %107 = arith.divf %105, %106 : vector<8x32xf32>
    %108 = arith.mulf %99, %22 : vector<8x32xf32>
    %109 = arith.mulf %93, %101 : vector<8x32xf32>
    %110 = arith.addf %108, %109 : vector<8x32xf32>
    %111 = math.tanh %110 : vector<8x32xf32>
    %112 = arith.mulf %107, %111 : vector<8x32xf32>
    %113 = arith.truncf %112 : vector<8x32xf32> to vector<8x32xbf16>
    %c0_32 = arith.constant 0 : index
    %c0_33 = arith.constant 0 : index
    %114 = vector.load %arg11[%c0_32, %c0_33] : memref<64x32xbf16, #tpu.memory_space<vmem>>, vector<8x32xbf16>
    tpu.vector_store %arg11[%c0_32, %c0_33], %113 {strides = array<i32>} : memref<64x32xbf16, #tpu.memory_space<vmem>>, vector<8x32xbf16>,
    %115 = vector.extract_strided_slice %12 {offsets = [16, 0], sizes = [8, 128], strides = [1, 1]} : vector<64x128xf32> to vector<8x128xf32>
    %116 = arith.truncf %81 : vector<8x32xf32> to vector<8x32xbf16>
    %cst_34 = arith.constant dense<0.000000e+00> : vector<8x128xf32>
    %117 = tpu.matmul %116, %14, %cst_34 {dimension_numbers = #tpu.dot_dimension_numbers<[1], [0], [0], [1], [0, 0, 1, 1], [], []>} : vector<8x32xbf16>, vector<32x128xbf16>, vector<8x128xf32> -> vector<8x128xf32>
    %118 = arith.addf %115, %117 : vector<8x128xf32>
    %119 = vector.extract_strided_slice %118 {offsets = [0, 0], sizes = [8, 32], strides = [1, 1]} : vector<8x128xf32> to vector<8x32xf32>
    %120 = arith.negf %119 : vector<8x32xf32>
    %121 = math.exp %120 : vector<8x32xf32>
    %cst_35 = arith.constant 1.000000e+00 : f32
    %122 = vector.broadcast %cst_35 : f32 to vector<8x32xf32>
    %123 = arith.addf %122, %121 : vector<8x32xf32>
    %124 = arith.divf %122, %123 : vector<8x32xf32>
    %125 = vector.extract_strided_slice %118 {offsets = [0, 32], sizes = [8, 32], strides = [1, 1]} : vector<8x128xf32> to vector<8x32xf32>
    %126 = arith.negf %125 : vector<8x32xf32>
    %127 = math.exp %126 : vector<8x32xf32>
    %cst_36 = arith.constant 1.000000e+00 : f32
    %128 = vector.broadcast %cst_36 : f32 to vector<8x32xf32>
    %129 = arith.addf %128, %127 : vector<8x32xf32>
    %130 = arith.divf %128, %129 : vector<8x32xf32>
    %131 = vector.extract_strided_slice %118 {offsets = [0, 64], sizes = [8, 32], strides = [1, 1]} : vector<8x128xf32> to vector<8x32xf32>
    %132 = math.tanh %131 : vector<8x32xf32>
    %133 = vector.extract_strided_slice %118 {offsets = [0, 96], sizes = [8, 32], strides = [1, 1]} : vector<8x128xf32> to vector<8x32xf32>
    %134 = arith.negf %133 : vector<8x32xf32>
    %135 = math.exp %134 : vector<8x32xf32>
    %cst_37 = arith.constant 1.000000e+00 : f32
    %136 = vector.broadcast %cst_37 : f32 to vector<8x32xf32>
    %137 = arith.addf %136, %135 : vector<8x32xf32>
    %138 = arith.divf %136, %137 : vector<8x32xf32>
    %139 = arith.mulf %130, %79 : vector<8x32xf32>
    %140 = arith.mulf %124, %132 : vector<8x32xf32>
    %141 = arith.addf %139, %140 : vector<8x32xf32>
    %142 = math.tanh %141 : vector<8x32xf32>
    %143 = arith.mulf %138, %142 : vector<8x32xf32>
    %144 = arith.truncf %143 : vector<8x32xf32> to vector<8x32xbf16>
    %cst_38 = arith.constant dense<0.000000e+00> : vector<8x128xf32>
    %145 = tpu.matmul %82, %13, %cst_38 {dimension_numbers = #tpu.dot_dimension_numbers<[1], [0], [0], [1], [0, 0, 1, 1], [], []>} : vector<8x32xbf16>, vector<32x128xbf16>, vector<8x128xf32> -> vector<8x128xf32>
    %146 = arith.truncf %112 : vector<8x32xf32> to vector<8x32xbf16>
    %cst_39 = arith.constant dense<0.000000e+00> : vector<8x128xf32>
    %147 = tpu.matmul %146, %15, %cst_39 {dimension_numbers = #tpu.dot_dimension_numbers<[1], [0], [0], [1], [0, 0, 1, 1], [], []>} : vector<8x32xbf16>, vector<32x128xbf16>, vector<8x128xf32> -> vector<8x128xf32>
    %148 = arith.addf %145, %147 : vector<8x128xf32>
    %149 = arith.addf %148, %18 : vector<8x128xf32>
    %150 = vector.extract_strided_slice %149 {offsets = [0, 0], sizes = [8, 32], strides = [1, 1]} : vector<8x128xf32> to vector<8x32xf32>
    %151 = arith.negf %150 : vector<8x32xf32>
    %152 = math.exp %151 : vector<8x32xf32>
    %cst_40 = arith.constant 1.000000e+00 : f32
    %153 = vector.broadcast %cst_40 : f32 to vector<8x32xf32>
    %154 = arith.addf %153, %152 : vector<8x32xf32>
    %155 = arith.divf %153, %154 : vector<8x32xf32>
    %156 = vector.extract_strided_slice %149 {offsets = [0, 32], sizes = [8, 32], strides = [1, 1]} : vector<8x128xf32> to vector<8x32xf32>
    %157 = arith.negf %156 : vector<8x32xf32>
    %158 = math.exp %157 : vector<8x32xf32>
    %cst_41 = arith.constant 1.000000e+00 : f32
    %159 = vector.broadcast %cst_41 : f32 to vector<8x32xf32>
    %160 = arith.addf %159, %158 : vector<8x32xf32>
    %161 = arith.divf %159, %160 : vector<8x32xf32>
    %162 = vector.extract_strided_slice %149 {offsets = [0, 64], sizes = [8, 32], strides = [1, 1]} : vector<8x128xf32> to vector<8x32xf32>
    %163 = math.tanh %162 : vector<8x32xf32>
    %164 = vector.extract_strided_slice %149 {offsets = [0, 96], sizes = [8, 32], strides = [1, 1]} : vector<8x128xf32> to vector<8x32xf32>
    %165 = arith.negf %164 : vector<8x32xf32>
    %166 = math.exp %165 : vector<8x32xf32>
    %cst_42 = arith.constant 1.000000e+00 : f32
    %167 = vector.broadcast %cst_42 : f32 to vector<8x32xf32>
    %168 = arith.addf %167, %166 : vector<8x32xf32>
    %169 = arith.divf %167, %168 : vector<8x32xf32>
    %170 = arith.mulf %161, %110 : vector<8x32xf32>
    %171 = arith.mulf %155, %163 : vector<8x32xf32>
    %172 = arith.addf %170, %171 : vector<8x32xf32>
    %173 = math.tanh %172 : vector<8x32xf32>
    %174 = arith.mulf %169, %173 : vector<8x32xf32>
    %175 = arith.truncf %174 : vector<8x32xf32> to vector<8x32xbf16>
    %c8 = arith.constant 8 : index
    %c0_43 = arith.constant 0 : index
    %176 = vector.load %arg11[%c8, %c0_43] : memref<64x32xbf16, #tpu.memory_space<vmem>>, vector<8x32xbf16>
    tpu.vector_store %arg11[%c8, %c0_43], %175 {strides = array<i32>} : memref<64x32xbf16, #tpu.memory_space<vmem>>, vector<8x32xbf16>,
    %177 = vector.extract_strided_slice %12 {offsets = [24, 0], sizes = [8, 128], strides = [1, 1]} : vector<64x128xf32> to vector<8x128xf32>
    %178 = arith.truncf %143 : vector<8x32xf32> to vector<8x32xbf16>
    %cst_44 = arith.constant dense<0.000000e+00> : vector<8x128xf32>
    %179 = tpu.matmul %178, %14, %cst_44 {dimension_numbers = #tpu.dot_dimension_numbers<[1], [0], [0], [1], [0, 0, 1, 1], [], []>} : vector<8x32xbf16>, vector<32x128xbf16>, vector<8x128xf32> -> vector<8x128xf32>
    %180 = arith.addf %177, %179 : vector<8x128xf32>
    %181 = vector.extract_strided_slice %180 {offsets = [0, 0], sizes = [8, 32], strides = [1, 1]} : vector<8x128xf32> to vector<8x32xf32>
    %182 = arith.negf %181 : vector<8x32xf32>
    %183 = math.exp %182 : vector<8x32xf32>
    %cst_45 = arith.constant 1.000000e+00 : f32
    %184 = vector.broadcast %cst_45 : f32 to vector<8x32xf32>
    %185 = arith.addf %184, %183 : vector<8x32xf32>
    %186 = arith.divf %184, %185 : vector<8x32xf32>
    %187 = vector.extract_strided_slice %180 {offsets = [0, 32], sizes = [8, 32], strides = [1, 1]} : vector<8x128xf32> to vector<8x32xf32>
    %188 = arith.negf %187 : vector<8x32xf32>
    %189 = math.exp %188 : vector<8x32xf32>
    %cst_46 = arith.constant 1.000000e+00 : f32
    %190 = vector.broadcast %cst_46 : f32 to vector<8x32xf32>
    %191 = arith.addf %190, %189 : vector<8x32xf32>
    %192 = arith.divf %190, %191 : vector<8x32xf32>
    %193 = vector.extract_strided_slice %180 {offsets = [0, 64], sizes = [8, 32], strides = [1, 1]} : vector<8x128xf32> to vector<8x32xf32>
    %194 = math.tanh %193 : vector<8x32xf32>
    %195 = vector.extract_strided_slice %180 {offsets = [0, 96], sizes = [8, 32], strides = [1, 1]} : vector<8x128xf32> to vector<8x32xf32>
    %196 = arith.negf %195 : vector<8x32xf32>
    %197 = math.exp %196 : vector<8x32xf32>
    %cst_47 = arith.constant 1.000000e+00 : f32
    %198 = vector.broadcast %cst_47 : f32 to vector<8x32xf32>
    %199 = arith.addf %198, %197 : vector<8x32xf32>
    %200 = arith.divf %198, %199 : vector<8x32xf32>
    %201 = arith.mulf %192, %141 : vector<8x32xf32>
    %202 = arith.mulf %186, %194 : vector<8x32xf32>
    %203 = arith.addf %201, %202 : vector<8x32xf32>
    %204 = math.tanh %203 : vector<8x32xf32>
    %205 = arith.mulf %200, %204 : vector<8x32xf32>
    %206 = arith.truncf %205 : vector<8x32xf32> to vector<8x32xbf16>
    %cst_48 = arith.constant dense<0.000000e+00> : vector<8x128xf32>
    %207 = tpu.matmul %144, %13, %cst_48 {dimension_numbers = #tpu.dot_dimension_numbers<[1], [0], [0], [1], [0, 0, 1, 1], [], []>} : vector<8x32xbf16>, vector<32x128xbf16>, vector<8x128xf32> -> vector<8x128xf32>
    %208 = arith.truncf %174 : vector<8x32xf32> to vector<8x32xbf16>
    %cst_49 = arith.constant dense<0.000000e+00> : vector<8x128xf32>
    %209 = tpu.matmul %208, %15, %cst_49 {dimension_numbers = #tpu.dot_dimension_numbers<[1], [0], [0], [1], [0, 0, 1, 1], [], []>} : vector<8x32xbf16>, vector<32x128xbf16>, vector<8x128xf32> -> vector<8x128xf32>
    %210 = arith.addf %207, %209 : vector<8x128xf32>
    %211 = arith.addf %210, %18 : vector<8x128xf32>
    %212 = vector.extract_strided_slice %211 {offsets = [0, 0], sizes = [8, 32], strides = [1, 1]} : vector<8x128xf32> to vector<8x32xf32>
    %213 = arith.negf %212 : vector<8x32xf32>
    %214 = math.exp %213 : vector<8x32xf32>
    %cst_50 = arith.constant 1.000000e+00 : f32
    %215 = vector.broadcast %cst_50 : f32 to vector<8x32xf32>
    %216 = arith.addf %215, %214 : vector<8x32xf32>
    %217 = arith.divf %215, %216 : vector<8x32xf32>
    %218 = vector.extract_strided_slice %211 {offsets = [0, 32], sizes = [8, 32], strides = [1, 1]} : vector<8x128xf32> to vector<8x32xf32>
    %219 = arith.negf %218 : vector<8x32xf32>
    %220 = math.exp %219 : vector<8x32xf32>
    %cst_51 = arith.constant 1.000000e+00 : f32
    %221 = vector.broadcast %cst_51 : f32 to vector<8x32xf32>
    %222 = arith.addf %221, %220 : vector<8x32xf32>
    %223 = arith.divf %221, %222 : vector<8x32xf32>
    %224 = vector.extract_strided_slice %211 {offsets = [0, 64], sizes = [8, 32], strides = [1, 1]} : vector<8x128xf32> to vector<8x32xf32>
    %225 = math.tanh %224 : vector<8x32xf32>
    %226 = vector.extract_strided_slice %211 {offsets = [0, 96], sizes = [8, 32], strides = [1, 1]} : vector<8x128xf32> to vector<8x32xf32>
    %227 = arith.negf %226 : vector<8x32xf32>
    %228 = math.exp %227 : vector<8x32xf32>
    %cst_52 = arith.constant 1.000000e+00 : f32
    %229 = vector.broadcast %cst_52 : f32 to vector<8x32xf32>
    %230 = arith.addf %229, %228 : vector<8x32xf32>
    %231 = arith.divf %229, %230 : vector<8x32xf32>
    %232 = arith.mulf %223, %172 : vector<8x32xf32>
    %233 = arith.mulf %217, %225 : vector<8x32xf32>
    %234 = arith.addf %232, %233 : vector<8x32xf32>
    %235 = math.tanh %234 : vector<8x32xf32>
    %236 = arith.mulf %231, %235 : vector<8x32xf32>
    %237 = arith.truncf %236 : vector<8x32xf32> to vector<8x32xbf16>
    %c16 = arith.constant 16 : index
    %c0_53 = arith.constant 0 : index
    %238 = vector.load %arg11[%c16, %c0_53] : memref<64x32xbf16, #tpu.memory_space<vmem>>, vector<8x32xbf16>
    tpu.vector_store %arg11[%c16, %c0_53], %237 {strides = array<i32>} : memref<64x32xbf16, #tpu.memory_space<vmem>>, vector<8x32xbf16>,
    %239 = vector.extract_strided_slice %12 {offsets = [32, 0], sizes = [8, 128], strides = [1, 1]} : vector<64x128xf32> to vector<8x128xf32>
    %240 = arith.truncf %205 : vector<8x32xf32> to vector<8x32xbf16>
    %cst_54 = arith.constant dense<0.000000e+00> : vector<8x128xf32>
    %241 = tpu.matmul %240, %14, %cst_54 {dimension_numbers = #tpu.dot_dimension_numbers<[1], [0], [0], [1], [0, 0, 1, 1], [], []>} : vector<8x32xbf16>, vector<32x128xbf16>, vector<8x128xf32> -> vector<8x128xf32>
    %242 = arith.addf %239, %241 : vector<8x128xf32>
    %243 = vector.extract_strided_slice %242 {offsets = [0, 0], sizes = [8, 32], strides = [1, 1]} : vector<8x128xf32> to vector<8x32xf32>
    %244 = arith.negf %243 : vector<8x32xf32>
    %245 = math.exp %244 : vector<8x32xf32>
    %cst_55 = arith.constant 1.000000e+00 : f32
    %246 = vector.broadcast %cst_55 : f32 to vector<8x32xf32>
    %247 = arith.addf %246, %245 : vector<8x32xf32>
    %248 = arith.divf %246, %247 : vector<8x32xf32>
    %249 = vector.extract_strided_slice %242 {offsets = [0, 32], sizes = [8, 32], strides = [1, 1]} : vector<8x128xf32> to vector<8x32xf32>
    %250 = arith.negf %249 : vector<8x32xf32>
    %251 = math.exp %250 : vector<8x32xf32>
    %cst_56 = arith.constant 1.000000e+00 : f32
    %252 = vector.broadcast %cst_56 : f32 to vector<8x32xf32>
    %253 = arith.addf %252, %251 : vector<8x32xf32>
    %254 = arith.divf %252, %253 : vector<8x32xf32>
    %255 = vector.extract_strided_slice %242 {offsets = [0, 64], sizes = [8, 32], strides = [1, 1]} : vector<8x128xf32> to vector<8x32xf32>
    %256 = math.tanh %255 : vector<8x32xf32>
    %257 = vector.extract_strided_slice %242 {offsets = [0, 96], sizes = [8, 32], strides = [1, 1]} : vector<8x128xf32> to vector<8x32xf32>
    %258 = arith.negf %257 : vector<8x32xf32>
    %259 = math.exp %258 : vector<8x32xf32>
    %cst_57 = arith.constant 1.000000e+00 : f32
    %260 = vector.broadcast %cst_57 : f32 to vector<8x32xf32>
    %261 = arith.addf %260, %259 : vector<8x32xf32>
    %262 = arith.divf %260, %261 : vector<8x32xf32>
    %263 = arith.mulf %254, %203 : vector<8x32xf32>
    %264 = arith.mulf %248, %256 : vector<8x32xf32>
    %265 = arith.addf %263, %264 : vector<8x32xf32>
    %266 = math.tanh %265 : vector<8x32xf32>
    %267 = arith.mulf %262, %266 : vector<8x32xf32>
    %268 = arith.truncf %267 : vector<8x32xf32> to vector<8x32xbf16>
    %cst_58 = arith.constant dense<0.000000e+00> : vector<8x128xf32>
    %269 = tpu.matmul %206, %13, %cst_58 {dimension_numbers = #tpu.dot_dimension_numbers<[1], [0], [0], [1], [0, 0, 1, 1], [], []>} : vector<8x32xbf16>, vector<32x128xbf16>, vector<8x128xf32> -> vector<8x128xf32>
    %270 = arith.truncf %236 : vector<8x32xf32> to vector<8x32xbf16>
    %cst_59 = arith.constant dense<0.000000e+00> : vector<8x128xf32>
    %271 = tpu.matmul %270, %15, %cst_59 {dimension_numbers = #tpu.dot_dimension_numbers<[1], [0], [0], [1], [0, 0, 1, 1], [], []>} : vector<8x32xbf16>, vector<32x128xbf16>, vector<8x128xf32> -> vector<8x128xf32>
    %272 = arith.addf %269, %271 : vector<8x128xf32>
    %273 = arith.addf %272, %18 : vector<8x128xf32>
    %274 = vector.extract_strided_slice %273 {offsets = [0, 0], sizes = [8, 32], strides = [1, 1]} : vector<8x128xf32> to vector<8x32xf32>
    %275 = arith.negf %274 : vector<8x32xf32>
    %276 = math.exp %275 : vector<8x32xf32>
    %cst_60 = arith.constant 1.000000e+00 : f32
    %277 = vector.broadcast %cst_60 : f32 to vector<8x32xf32>
    %278 = arith.addf %277, %276 : vector<8x32xf32>
    %279 = arith.divf %277, %278 : vector<8x32xf32>
    %280 = vector.extract_strided_slice %273 {offsets = [0, 32], sizes = [8, 32], strides = [1, 1]} : vector<8x128xf32> to vector<8x32xf32>
    %281 = arith.negf %280 : vector<8x32xf32>
    %282 = math.exp %281 : vector<8x32xf32>
    %cst_61 = arith.constant 1.000000e+00 : f32
    %283 = vector.broadcast %cst_61 : f32 to vector<8x32xf32>
    %284 = arith.addf %283, %282 : vector<8x32xf32>
    %285 = arith.divf %283, %284 : vector<8x32xf32>
    %286 = vector.extract_strided_slice %273 {offsets = [0, 64], sizes = [8, 32], strides = [1, 1]} : vector<8x128xf32> to vector<8x32xf32>
    %287 = math.tanh %286 : vector<8x32xf32>
    %288 = vector.extract_strided_slice %273 {offsets = [0, 96], sizes = [8, 32], strides = [1, 1]} : vector<8x128xf32> to vector<8x32xf32>
    %289 = arith.negf %288 : vector<8x32xf32>
    %290 = math.exp %289 : vector<8x32xf32>
    %cst_62 = arith.constant 1.000000e+00 : f32
    %291 = vector.broadcast %cst_62 : f32 to vector<8x32xf32>
    %292 = arith.addf %291, %290 : vector<8x32xf32>
    %293 = arith.divf %291, %292 : vector<8x32xf32>
    %294 = arith.mulf %285, %234 : vector<8x32xf32>
    %295 = arith.mulf %279, %287 : vector<8x32xf32>
    %296 = arith.addf %294, %295 : vector<8x32xf32>
    %297 = math.tanh %296 : vector<8x32xf32>
    %298 = arith.mulf %293, %297 : vector<8x32xf32>
    %299 = arith.truncf %298 : vector<8x32xf32> to vector<8x32xbf16>
    %c24 = arith.constant 24 : index
    %c0_63 = arith.constant 0 : index
    %300 = vector.load %arg11[%c24, %c0_63] : memref<64x32xbf16, #tpu.memory_space<vmem>>, vector<8x32xbf16>
    tpu.vector_store %arg11[%c24, %c0_63], %299 {strides = array<i32>} : memref<64x32xbf16, #tpu.memory_space<vmem>>, vector<8x32xbf16>,
    %301 = vector.extract_strided_slice %12 {offsets = [40, 0], sizes = [8, 128], strides = [1, 1]} : vector<64x128xf32> to vector<8x128xf32>
    %302 = arith.truncf %267 : vector<8x32xf32> to vector<8x32xbf16>
    %cst_64 = arith.constant dense<0.000000e+00> : vector<8x128xf32>
    %303 = tpu.matmul %302, %14, %cst_64 {dimension_numbers = #tpu.dot_dimension_numbers<[1], [0], [0], [1], [0, 0, 1, 1], [], []>} : vector<8x32xbf16>, vector<32x128xbf16>, vector<8x128xf32> -> vector<8x128xf32>
    %304 = arith.addf %301, %303 : vector<8x128xf32>
    %305 = vector.extract_strided_slice %304 {offsets = [0, 0], sizes = [8, 32], strides = [1, 1]} : vector<8x128xf32> to vector<8x32xf32>
    %306 = arith.negf %305 : vector<8x32xf32>
    %307 = math.exp %306 : vector<8x32xf32>
    %cst_65 = arith.constant 1.000000e+00 : f32
    %308 = vector.broadcast %cst_65 : f32 to vector<8x32xf32>
    %309 = arith.addf %308, %307 : vector<8x32xf32>
    %310 = arith.divf %308, %309 : vector<8x32xf32>
    %311 = vector.extract_strided_slice %304 {offsets = [0, 32], sizes = [8, 32], strides = [1, 1]} : vector<8x128xf32> to vector<8x32xf32>
    %312 = arith.negf %311 : vector<8x32xf32>
    %313 = math.exp %312 : vector<8x32xf32>
    %cst_66 = arith.constant 1.000000e+00 : f32
    %314 = vector.broadcast %cst_66 : f32 to vector<8x32xf32>
    %315 = arith.addf %314, %313 : vector<8x32xf32>
    %316 = arith.divf %314, %315 : vector<8x32xf32>
    %317 = vector.extract_strided_slice %304 {offsets = [0, 64], sizes = [8, 32], strides = [1, 1]} : vector<8x128xf32> to vector<8x32xf32>
    %318 = math.tanh %317 : vector<8x32xf32>
    %319 = vector.extract_strided_slice %304 {offsets = [0, 96], sizes = [8, 32], strides = [1, 1]} : vector<8x128xf32> to vector<8x32xf32>
    %320 = arith.negf %319 : vector<8x32xf32>
    %321 = math.exp %320 : vector<8x32xf32>
    %cst_67 = arith.constant 1.000000e+00 : f32
    %322 = vector.broadcast %cst_67 : f32 to vector<8x32xf32>
    %323 = arith.addf %322, %321 : vector<8x32xf32>
    %324 = arith.divf %322, %323 : vector<8x32xf32>
    %325 = arith.mulf %316, %265 : vector<8x32xf32>
    %326 = arith.mulf %310, %318 : vector<8x32xf32>
    %327 = arith.addf %325, %326 : vector<8x32xf32>
    %328 = math.tanh %327 : vector<8x32xf32>
    %329 = arith.mulf %324, %328 : vector<8x32xf32>
    %330 = arith.truncf %329 : vector<8x32xf32> to vector<8x32xbf16>
    %cst_68 = arith.constant dense<0.000000e+00> : vector<8x128xf32>
    %331 = tpu.matmul %268, %13, %cst_68 {dimension_numbers = #tpu.dot_dimension_numbers<[1], [0], [0], [1], [0, 0, 1, 1], [], []>} : vector<8x32xbf16>, vector<32x128xbf16>, vector<8x128xf32> -> vector<8x128xf32>
    %332 = arith.truncf %298 : vector<8x32xf32> to vector<8x32xbf16>
    %cst_69 = arith.constant dense<0.000000e+00> : vector<8x128xf32>
    %333 = tpu.matmul %332, %15, %cst_69 {dimension_numbers = #tpu.dot_dimension_numbers<[1], [0], [0], [1], [0, 0, 1, 1], [], []>} : vector<8x32xbf16>, vector<32x128xbf16>, vector<8x128xf32> -> vector<8x128xf32>
    %334 = arith.addf %331, %333 : vector<8x128xf32>
    %335 = arith.addf %334, %18 : vector<8x128xf32>
    %336 = vector.extract_strided_slice %335 {offsets = [0, 0], sizes = [8, 32], strides = [1, 1]} : vector<8x128xf32> to vector<8x32xf32>
    %337 = arith.negf %336 : vector<8x32xf32>
    %338 = math.exp %337 : vector<8x32xf32>
    %cst_70 = arith.constant 1.000000e+00 : f32
    %339 = vector.broadcast %cst_70 : f32 to vector<8x32xf32>
    %340 = arith.addf %339, %338 : vector<8x32xf32>
    %341 = arith.divf %339, %340 : vector<8x32xf32>
    %342 = vector.extract_strided_slice %335 {offsets = [0, 32], sizes = [8, 32], strides = [1, 1]} : vector<8x128xf32> to vector<8x32xf32>
    %343 = arith.negf %342 : vector<8x32xf32>
    %344 = math.exp %343 : vector<8x32xf32>
    %cst_71 = arith.constant 1.000000e+00 : f32
    %345 = vector.broadcast %cst_71 : f32 to vector<8x32xf32>
    %346 = arith.addf %345, %344 : vector<8x32xf32>
    %347 = arith.divf %345, %346 : vector<8x32xf32>
    %348 = vector.extract_strided_slice %335 {offsets = [0, 64], sizes = [8, 32], strides = [1, 1]} : vector<8x128xf32> to vector<8x32xf32>
    %349 = math.tanh %348 : vector<8x32xf32>
    %350 = vector.extract_strided_slice %335 {offsets = [0, 96], sizes = [8, 32], strides = [1, 1]} : vector<8x128xf32> to vector<8x32xf32>
    %351 = arith.negf %350 : vector<8x32xf32>
    %352 = math.exp %351 : vector<8x32xf32>
    %cst_72 = arith.constant 1.000000e+00 : f32
    %353 = vector.broadcast %cst_72 : f32 to vector<8x32xf32>
    %354 = arith.addf %353, %352 : vector<8x32xf32>
    %355 = arith.divf %353, %354 : vector<8x32xf32>
    %356 = arith.mulf %347, %296 : vector<8x32xf32>
    %357 = arith.mulf %341, %349 : vector<8x32xf32>
    %358 = arith.addf %356, %357 : vector<8x32xf32>
    %359 = math.tanh %358 : vector<8x32xf32>
    %360 = arith.mulf %355, %359 : vector<8x32xf32>
    %361 = arith.truncf %360 : vector<8x32xf32> to vector<8x32xbf16>
    %c32 = arith.constant 32 : index
    %c0_73 = arith.constant 0 : index
    %362 = vector.load %arg11[%c32, %c0_73] : memref<64x32xbf16, #tpu.memory_space<vmem>>, vector<8x32xbf16>
    tpu.vector_store %arg11[%c32, %c0_73], %361 {strides = array<i32>} : memref<64x32xbf16, #tpu.memory_space<vmem>>, vector<8x32xbf16>,
    %363 = vector.extract_strided_slice %12 {offsets = [48, 0], sizes = [8, 128], strides = [1, 1]} : vector<64x128xf32> to vector<8x128xf32>
    %364 = arith.truncf %329 : vector<8x32xf32> to vector<8x32xbf16>
    %cst_74 = arith.constant dense<0.000000e+00> : vector<8x128xf32>
    %365 = tpu.matmul %364, %14, %cst_74 {dimension_numbers = #tpu.dot_dimension_numbers<[1], [0], [0], [1], [0, 0, 1, 1], [], []>} : vector<8x32xbf16>, vector<32x128xbf16>, vector<8x128xf32> -> vector<8x128xf32>
    %366 = arith.addf %363, %365 : vector<8x128xf32>
    %367 = vector.extract_strided_slice %366 {offsets = [0, 0], sizes = [8, 32], strides = [1, 1]} : vector<8x128xf32> to vector<8x32xf32>
    %368 = arith.negf %367 : vector<8x32xf32>
    %369 = math.exp %368 : vector<8x32xf32>
    %cst_75 = arith.constant 1.000000e+00 : f32
    %370 = vector.broadcast %cst_75 : f32 to vector<8x32xf32>
    %371 = arith.addf %370, %369 : vector<8x32xf32>
    %372 = arith.divf %370, %371 : vector<8x32xf32>
    %373 = vector.extract_strided_slice %366 {offsets = [0, 32], sizes = [8, 32], strides = [1, 1]} : vector<8x128xf32> to vector<8x32xf32>
    %374 = arith.negf %373 : vector<8x32xf32>
    %375 = math.exp %374 : vector<8x32xf32>
    %cst_76 = arith.constant 1.000000e+00 : f32
    %376 = vector.broadcast %cst_76 : f32 to vector<8x32xf32>
    %377 = arith.addf %376, %375 : vector<8x32xf32>
    %378 = arith.divf %376, %377 : vector<8x32xf32>
    %379 = vector.extract_strided_slice %366 {offsets = [0, 64], sizes = [8, 32], strides = [1, 1]} : vector<8x128xf32> to vector<8x32xf32>
    %380 = math.tanh %379 : vector<8x32xf32>
    %381 = vector.extract_strided_slice %366 {offsets = [0, 96], sizes = [8, 32], strides = [1, 1]} : vector<8x128xf32> to vector<8x32xf32>
    %382 = arith.negf %381 : vector<8x32xf32>
    %383 = math.exp %382 : vector<8x32xf32>
    %cst_77 = arith.constant 1.000000e+00 : f32
    %384 = vector.broadcast %cst_77 : f32 to vector<8x32xf32>
    %385 = arith.addf %384, %383 : vector<8x32xf32>
    %386 = arith.divf %384, %385 : vector<8x32xf32>
    %387 = arith.mulf %378, %327 : vector<8x32xf32>
    %388 = arith.mulf %372, %380 : vector<8x32xf32>
    %389 = arith.addf %387, %388 : vector<8x32xf32>
    %390 = math.tanh %389 : vector<8x32xf32>
    %391 = arith.mulf %386, %390 : vector<8x32xf32>
    %392 = arith.truncf %391 : vector<8x32xf32> to vector<8x32xbf16>
    %cst_78 = arith.constant dense<0.000000e+00> : vector<8x128xf32>
    %393 = tpu.matmul %330, %13, %cst_78 {dimension_numbers = #tpu.dot_dimension_numbers<[1], [0], [0], [1], [0, 0, 1, 1], [], []>} : vector<8x32xbf16>, vector<32x128xbf16>, vector<8x128xf32> -> vector<8x128xf32>
    %394 = arith.truncf %360 : vector<8x32xf32> to vector<8x32xbf16>
    %cst_79 = arith.constant dense<0.000000e+00> : vector<8x128xf32>
    %395 = tpu.matmul %394, %15, %cst_79 {dimension_numbers = #tpu.dot_dimension_numbers<[1], [0], [0], [1], [0, 0, 1, 1], [], []>} : vector<8x32xbf16>, vector<32x128xbf16>, vector<8x128xf32> -> vector<8x128xf32>
    %396 = arith.addf %393, %395 : vector<8x128xf32>
    %397 = arith.addf %396, %18 : vector<8x128xf32>
    %398 = vector.extract_strided_slice %397 {offsets = [0, 0], sizes = [8, 32], strides = [1, 1]} : vector<8x128xf32> to vector<8x32xf32>
    %399 = arith.negf %398 : vector<8x32xf32>
    %400 = math.exp %399 : vector<8x32xf32>
    %cst_80 = arith.constant 1.000000e+00 : f32
    %401 = vector.broadcast %cst_80 : f32 to vector<8x32xf32>
    %402 = arith.addf %401, %400 : vector<8x32xf32>
    %403 = arith.divf %401, %402 : vector<8x32xf32>
    %404 = vector.extract_strided_slice %397 {offsets = [0, 32], sizes = [8, 32], strides = [1, 1]} : vector<8x128xf32> to vector<8x32xf32>
    %405 = arith.negf %404 : vector<8x32xf32>
    %406 = math.exp %405 : vector<8x32xf32>
    %cst_81 = arith.constant 1.000000e+00 : f32
    %407 = vector.broadcast %cst_81 : f32 to vector<8x32xf32>
    %408 = arith.addf %407, %406 : vector<8x32xf32>
    %409 = arith.divf %407, %408 : vector<8x32xf32>
    %410 = vector.extract_strided_slice %397 {offsets = [0, 64], sizes = [8, 32], strides = [1, 1]} : vector<8x128xf32> to vector<8x32xf32>
    %411 = math.tanh %410 : vector<8x32xf32>
    %412 = vector.extract_strided_slice %397 {offsets = [0, 96], sizes = [8, 32], strides = [1, 1]} : vector<8x128xf32> to vector<8x32xf32>
    %413 = arith.negf %412 : vector<8x32xf32>
    %414 = math.exp %413 : vector<8x32xf32>
    %cst_82 = arith.constant 1.000000e+00 : f32
    %415 = vector.broadcast %cst_82 : f32 to vector<8x32xf32>
    %416 = arith.addf %415, %414 : vector<8x32xf32>
    %417 = arith.divf %415, %416 : vector<8x32xf32>
    %418 = arith.mulf %409, %358 : vector<8x32xf32>
    %419 = arith.mulf %403, %411 : vector<8x32xf32>
    %420 = arith.addf %418, %419 : vector<8x32xf32>
    %421 = math.tanh %420 : vector<8x32xf32>
    %422 = arith.mulf %417, %421 : vector<8x32xf32>
    %423 = arith.truncf %422 : vector<8x32xf32> to vector<8x32xbf16>
    %c40 = arith.constant 40 : index
    %c0_83 = arith.constant 0 : index
    %424 = vector.load %arg11[%c40, %c0_83] : memref<64x32xbf16, #tpu.memory_space<vmem>>, vector<8x32xbf16>
    tpu.vector_store %arg11[%c40, %c0_83], %423 {strides = array<i32>} : memref<64x32xbf16, #tpu.memory_space<vmem>>, vector<8x32xbf16>,
    %425 = vector.extract_strided_slice %12 {offsets = [56, 0], sizes = [8, 128], strides = [1, 1]} : vector<64x128xf32> to vector<8x128xf32>
    %426 = arith.truncf %391 : vector<8x32xf32> to vector<8x32xbf16>
    %cst_84 = arith.constant dense<0.000000e+00> : vector<8x128xf32>
    %427 = tpu.matmul %426, %14, %cst_84 {dimension_numbers = #tpu.dot_dimension_numbers<[1], [0], [0], [1], [0, 0, 1, 1], [], []>} : vector<8x32xbf16>, vector<32x128xbf16>, vector<8x128xf32> -> vector<8x128xf32>
    %428 = arith.addf %425, %427 : vector<8x128xf32>
    %429 = vector.extract_strided_slice %428 {offsets = [0, 0], sizes = [8, 32], strides = [1, 1]} : vector<8x128xf32> to vector<8x32xf32>
    %430 = arith.negf %429 : vector<8x32xf32>
    %431 = math.exp %430 : vector<8x32xf32>
    %cst_85 = arith.constant 1.000000e+00 : f32
    %432 = vector.broadcast %cst_85 : f32 to vector<8x32xf32>
    %433 = arith.addf %432, %431 : vector<8x32xf32>
    %434 = arith.divf %432, %433 : vector<8x32xf32>
    %435 = vector.extract_strided_slice %428 {offsets = [0, 32], sizes = [8, 32], strides = [1, 1]} : vector<8x128xf32> to vector<8x32xf32>
    %436 = arith.negf %435 : vector<8x32xf32>
    %437 = math.exp %436 : vector<8x32xf32>
    %cst_86 = arith.constant 1.000000e+00 : f32
    %438 = vector.broadcast %cst_86 : f32 to vector<8x32xf32>
    %439 = arith.addf %438, %437 : vector<8x32xf32>
    %440 = arith.divf %438, %439 : vector<8x32xf32>
    %441 = vector.extract_strided_slice %428 {offsets = [0, 64], sizes = [8, 32], strides = [1, 1]} : vector<8x128xf32> to vector<8x32xf32>
    %442 = math.tanh %441 : vector<8x32xf32>
    %443 = vector.extract_strided_slice %428 {offsets = [0, 96], sizes = [8, 32], strides = [1, 1]} : vector<8x128xf32> to vector<8x32xf32>
    %444 = arith.negf %443 : vector<8x32xf32>
    %445 = math.exp %444 : vector<8x32xf32>
    %cst_87 = arith.constant 1.000000e+00 : f32
    %446 = vector.broadcast %cst_87 : f32 to vector<8x32xf32>
    %447 = arith.addf %446, %445 : vector<8x32xf32>
    %448 = arith.divf %446, %447 : vector<8x32xf32>
    %449 = arith.mulf %440, %389 : vector<8x32xf32>
    %450 = arith.mulf %434, %442 : vector<8x32xf32>
    %451 = arith.addf %449, %450 : vector<8x32xf32>
    %452 = math.tanh %451 : vector<8x32xf32>
    %453 = arith.mulf %448, %452 : vector<8x32xf32>
    %454 = arith.truncf %453 : vector<8x32xf32> to vector<8x32xbf16>
    %cst_88 = arith.constant dense<0.000000e+00> : vector<8x128xf32>
    %455 = tpu.matmul %392, %13, %cst_88 {dimension_numbers = #tpu.dot_dimension_numbers<[1], [0], [0], [1], [0, 0, 1, 1], [], []>} : vector<8x32xbf16>, vector<32x128xbf16>, vector<8x128xf32> -> vector<8x128xf32>
    %456 = arith.truncf %422 : vector<8x32xf32> to vector<8x32xbf16>
    %cst_89 = arith.constant dense<0.000000e+00> : vector<8x128xf32>
    %457 = tpu.matmul %456, %15, %cst_89 {dimension_numbers = #tpu.dot_dimension_numbers<[1], [0], [0], [1], [0, 0, 1, 1], [], []>} : vector<8x32xbf16>, vector<32x128xbf16>, vector<8x128xf32> -> vector<8x128xf32>
    %458 = arith.addf %455, %457 : vector<8x128xf32>
    %459 = arith.addf %458, %18 : vector<8x128xf32>
    %460 = vector.extract_strided_slice %459 {offsets = [0, 0], sizes = [8, 32], strides = [1, 1]} : vector<8x128xf32> to vector<8x32xf32>
    %461 = arith.negf %460 : vector<8x32xf32>
    %462 = math.exp %461 : vector<8x32xf32>
    %cst_90 = arith.constant 1.000000e+00 : f32
    %463 = vector.broadcast %cst_90 : f32 to vector<8x32xf32>
    %464 = arith.addf %463, %462 : vector<8x32xf32>
    %465 = arith.divf %463, %464 : vector<8x32xf32>
    %466 = vector.extract_strided_slice %459 {offsets = [0, 32], sizes = [8, 32], strides = [1, 1]} : vector<8x128xf32> to vector<8x32xf32>
    %467 = arith.negf %466 : vector<8x32xf32>
    %468 = math.exp %467 : vector<8x32xf32>
    %cst_91 = arith.constant 1.000000e+00 : f32
    %469 = vector.broadcast %cst_91 : f32 to vector<8x32xf32>
    %470 = arith.addf %469, %468 : vector<8x32xf32>
    %471 = arith.divf %469, %470 : vector<8x32xf32>
    %472 = vector.extract_strided_slice %459 {offsets = [0, 64], sizes = [8, 32], strides = [1, 1]} : vector<8x128xf32> to vector<8x32xf32>
    %473 = math.tanh %472 : vector<8x32xf32>
    %474 = vector.extract_strided_slice %459 {offsets = [0, 96], sizes = [8, 32], strides = [1, 1]} : vector<8x128xf32> to vector<8x32xf32>
    %475 = arith.negf %474 : vector<8x32xf32>
    %476 = math.exp %475 : vector<8x32xf32>
    %cst_92 = arith.constant 1.000000e+00 : f32
    %477 = vector.broadcast %cst_92 : f32 to vector<8x32xf32>
    %478 = arith.addf %477, %476 : vector<8x32xf32>
    %479 = arith.divf %477, %478 : vector<8x32xf32>
    %480 = arith.mulf %471, %420 : vector<8x32xf32>
    %481 = arith.mulf %465, %473 : vector<8x32xf32>
    %482 = arith.addf %480, %481 : vector<8x32xf32>
    %483 = math.tanh %482 : vector<8x32xf32>
    %484 = arith.mulf %479, %483 : vector<8x32xf32>
    %485 = arith.truncf %484 : vector<8x32xf32> to vector<8x32xbf16>
    %c48 = arith.constant 48 : index
    %c0_93 = arith.constant 0 : index
    %486 = vector.load %arg11[%c48, %c0_93] : memref<64x32xbf16, #tpu.memory_space<vmem>>, vector<8x32xbf16>
    tpu.vector_store %arg11[%c48, %c0_93], %485 {strides = array<i32>} : memref<64x32xbf16, #tpu.memory_space<vmem>>, vector<8x32xbf16>,
    %cst_94 = arith.constant dense<0.000000e+00> : vector<8x128xf32>
    %487 = tpu.matmul %454, %13, %cst_94 {dimension_numbers = #tpu.dot_dimension_numbers<[1], [0], [0], [1], [0, 0, 1, 1], [], []>} : vector<8x32xbf16>, vector<32x128xbf16>, vector<8x128xf32> -> vector<8x128xf32>
    %488 = arith.truncf %484 : vector<8x32xf32> to vector<8x32xbf16>
    %cst_95 = arith.constant dense<0.000000e+00> : vector<8x128xf32>
    %489 = tpu.matmul %488, %15, %cst_95 {dimension_numbers = #tpu.dot_dimension_numbers<[1], [0], [0], [1], [0, 0, 1, 1], [], []>} : vector<8x32xbf16>, vector<32x128xbf16>, vector<8x128xf32> -> vector<8x128xf32>
    %490 = arith.addf %487, %489 : vector<8x128xf32>
    %491 = arith.addf %490, %18 : vector<8x128xf32>
    %492 = vector.extract_strided_slice %491 {offsets = [0, 0], sizes = [8, 32], strides = [1, 1]} : vector<8x128xf32> to vector<8x32xf32>
    %493 = arith.negf %492 : vector<8x32xf32>
    %494 = math.exp %493 : vector<8x32xf32>
    %cst_96 = arith.constant 1.000000e+00 : f32
    %495 = vector.broadcast %cst_96 : f32 to vector<8x32xf32>
    %496 = arith.addf %495, %494 : vector<8x32xf32>
    %497 = arith.divf %495, %496 : vector<8x32xf32>
    %498 = vector.extract_strided_slice %491 {offsets = [0, 32], sizes = [8, 32], strides = [1, 1]} : vector<8x128xf32> to vector<8x32xf32>
    %499 = arith.negf %498 : vector<8x32xf32>
    %500 = math.exp %499 : vector<8x32xf32>
    %cst_97 = arith.constant 1.000000e+00 : f32
    %501 = vector.broadcast %cst_97 : f32 to vector<8x32xf32>
    %502 = arith.addf %501, %500 : vector<8x32xf32>
    %503 = arith.divf %501, %502 : vector<8x32xf32>
    %504 = vector.extract_strided_slice %491 {offsets = [0, 64], sizes = [8, 32], strides = [1, 1]} : vector<8x128xf32> to vector<8x32xf32>
    %505 = math.tanh %504 : vector<8x32xf32>
    %506 = vector.extract_strided_slice %491 {offsets = [0, 96], sizes = [8, 32], strides = [1, 1]} : vector<8x128xf32> to vector<8x32xf32>
    %507 = arith.negf %506 : vector<8x32xf32>
    %508 = math.exp %507 : vector<8x32xf32>
    %cst_98 = arith.constant 1.000000e+00 : f32
    %509 = vector.broadcast %cst_98 : f32 to vector<8x32xf32>
    %510 = arith.addf %509, %508 : vector<8x32xf32>
    %511 = arith.divf %509, %510 : vector<8x32xf32>
    %512 = arith.mulf %503, %482 : vector<8x32xf32>
    %513 = arith.mulf %497, %505 : vector<8x32xf32>
    %514 = arith.addf %512, %513 : vector<8x32xf32>
    %515 = math.tanh %514 : vector<8x32xf32>
    %516 = arith.mulf %511, %515 : vector<8x32xf32>
    %517 = arith.truncf %516 : vector<8x32xf32> to vector<8x32xbf16>
    %c56 = arith.constant 56 : index
    %c0_99 = arith.constant 0 : index
    %518 = vector.load %arg11[%c56, %c0_99] : memref<64x32xbf16, #tpu.memory_space<vmem>>, vector<8x32xbf16>
    tpu.vector_store %arg11[%c56, %c0_99], %517 {strides = array<i32>} : memref<64x32xbf16, #tpu.memory_space<vmem>>, vector<8x32xbf16>,
    %c0_100 = arith.constant 0 : index
    %c0_101 = arith.constant 0 : index
    %519 = vector.load %arg11[%c0_100, %c0_101] : memref<64x32xbf16, #tpu.memory_space<vmem>>, vector<64x32xbf16>
    %c0_102 = arith.constant 0 : index
    %c0_103 = arith.constant 0 : index
    %520 = vector.load %arg8[%c0_102, %c0_103] : memref<32x128xbf16, #tpu.memory_space<vmem>>, vector<32x128xbf16>
    %cst_104 = arith.constant dense<0.000000e+00> : vector<64x128xf32>
    %521 = tpu.matmul %519, %520, %cst_104 {dimension_numbers = #tpu.dot_dimension_numbers<[1], [0], [0], [1], [0, 0, 1, 1], [], []>} : vector<64x32xbf16>, vector<32x128xbf16>, vector<64x128xf32> -> vector<64x128xf32>
    %c0_105 = arith.constant 0 : index
    %c0_106 = arith.constant 0 : index
    %522 = vector.load %arg9[%c0_105, %c0_106] : memref<1x128xf32, #tpu.memory_space<vmem>>, vector<1x128xf32>
    %523 = vector.broadcast %522 : vector<1x128xf32> to vector<64x128xf32>
    %524 = arith.addf %521, %523 : vector<64x128xf32>
    %c0_107 = arith.constant 0 : index
    %c0_108 = arith.constant 0 : index
    %525 = vector.load %arg10[%c0_107, %c0_108] : memref<64x128xf32, #tpu.memory_space<vmem>>, vector<64x128xf32>
    tpu.vector_store %arg10[%c0_107, %c0_108], %524 {strides = array<i32>} : memref<64x128xf32, #tpu.memory_space<vmem>>, vector<64x128xf32>,
    return
  }
  func.func @transform_0(%arg0: i32) -> (i32, i32) {
    %c0_i32 = arith.constant 0 : i32
    %c0_i32_0 = arith.constant 0 : i32
    %c0_i32_1 = arith.constant 0 : i32
    return %c0_i32, %c0_i32_0 : i32, i32
  }
  func.func @transform_1(%arg0: i32) -> (i32, i32) {
    %c0_i32 = arith.constant 0 : i32
    %c0_i32_0 = arith.constant 0 : i32
    %c0_i32_1 = arith.constant 0 : i32
    return %c0_i32, %c0_i32_0 : i32, i32
  }
  func.func @transform_2(%arg0: i32) -> (i32, i32) {
    %c0_i32 = arith.constant 0 : i32
    %c0_i32_0 = arith.constant 0 : i32
    %c0_i32_1 = arith.constant 0 : i32
    return %c0_i32, %c0_i32_0 : i32, i32
  }
  func.func @transform_3(%arg0: i32) -> (i32, i32) {
    %c0_i32 = arith.constant 0 : i32
    %c0_i32_0 = arith.constant 0 : i32
    %c0_i32_1 = arith.constant 0 : i32
    return %c0_i32, %c0_i32_0 : i32, i32
  }
  func.func @transform_4(%arg0: i32) -> (i32, i32) {
    %c0_i32 = arith.constant 0 : i32
    %c0_i32_0 = arith.constant 0 : i32
    %c0_i32_1 = arith.constant 0 : i32
    return %c0_i32, %c0_i32_0 : i32, i32
  }
  func.func @transform_5(%arg0: i32) -> (i32, i32) {
    %c0_i32 = arith.constant 0 : i32
    %c0_i32_0 = arith.constant 0 : i32
    %c0_i32_1 = arith.constant 0 : i32
    return %c0_i32, %c0_i32_0 : i32, i32
  }
  func.func @transform_6(%arg0: i32) -> (i32, i32) {
    %c0_i32 = arith.constant 0 : i32
    %c0_i32_0 = arith.constant 0 : i32
    %c0_i32_1 = arith.constant 0 : i32
    return %c0_i32, %c0_i32_0 : i32, i32
  }
  func.func @transform_7(%arg0: i32) -> (i32, i32) {
    %c0_i32 = arith.constant 0 : i32
    %c0_i32_0 = arith.constant 0 : i32
    %c0_i32_1 = arith.constant 0 : i32
    return %c0_i32, %c0_i32_0 : i32, i32
  }
  func.func @transform_8(%arg0: i32) -> (i32, i32) {
    %c0_i32 = arith.constant 0 : i32
    %c0_i32_0 = arith.constant 0 : i32
    %c0_i32_1 = arith.constant 0 : i32
    return %c0_i32, %c0_i32_0 : i32, i32
  }
  func.func @transform_9(%arg0: i32) -> (i32, i32) {
    %c0_i32 = arith.constant 0 : i32
    %c0_i32_0 = arith.constant 0 : i32
    %c0_i32_1 = arith.constant 0 : i32
    return %c0_i32, %c0_i32_0 : i32, i32
  }
}

</mosaic_0001>

<llo_original>
// kernel: _lambda_.1
$region0: #{_lambda_.1}
  #allocation0 [shape = 'u32[]', space=smem, size = 0x4, offset = 0x4, fixed_abs, tag = 'smem constant byte address 0x4 - core index']
  #allocation1 [shape = 'u32[144,128]{1,0:T(1,128)}', space=vmem, size = 0x12000, scoped, tag = 'internal scratch']
  #allocation2 [shape = 'bf16[64,32]{1,0:T(16,128)(2,1)}', space=vmem, size = 0x4000, scoped, tag = 'scratch operand']
  %s0 = inlined_call_operand.vmem [shape: s32[64,1], index: 0, kind: input, shape index: {}]
  %s1 = inlined_call_operand.vmem [shape: bf16[16,128], index: 1, kind: input, shape index: {}]
  %s2 = inlined_call_operand.vmem [shape: bf16[32,128], index: 2, kind: input, shape index: {}]
  %s3 = inlined_call_operand.vmem [shape: f32[1,128], index: 3, kind: input, shape index: {}]
  %s4 = inlined_call_operand.vmem [shape: bf16[32,128], index: 4, kind: input, shape index: {}]
  %s5 = inlined_call_operand.vmem [shape: bf16[32,128], index: 5, kind: input, shape index: {}]
  %s6 = inlined_call_operand.vmem [shape: f32[1,128], index: 6, kind: input, shape index: {}]
  %s7 = inlined_call_operand.vmem [shape: bf16[32,128], index: 7, kind: input, shape index: {}]
  %s8 = inlined_call_operand.vmem [shape: f32[1,128], index: 8, kind: input, shape index: {}]
  %s9 = inlined_call_operand.vmem [shape: f32[64,128], index: 9, kind: output, shape index: {}]
  %s10 = sld [smem:[#allocation0]]
  $region46: #{_lambda_.1} parent=0
    _
  %s12 = ssub.s32 1, %s10
  %s13 = scalar_select 0, %s12, %s10
  // Predicated region
  $region2: #{_lambda_.1} parent=0 // pred_check
    _
  $region3: #{_lambda_.1} parent=0 // pred_check_branch
    %15 = sbr.rel (0) target = $region5
  $region4: #{_lambda_.1} parent=0 // pred_region
    _
  $region5: #{_lambda_.1} parent=0 // pred_fallthru
    _
  // Predicated region
  $region6: #{_lambda_.1} parent=0 // pred_check
    _
  $region7: #{_lambda_.1} parent=0 // pred_check_branch
    %17 = sbr.rel (0) target = $region9
  $region8: #{_lambda_.1} parent=0 // pred_region
    _
  $region9: #{_lambda_.1} parent=0 // pred_fallthru
    _
  // Predicated region
  $region10: #{_lambda_.1} parent=0 // pred_check
    _
  $region11: #{_lambda_.1} parent=0 // pred_check_branch
    %19 = sbr.rel (0) target = $region13
  $region12: #{_lambda_.1} parent=0 // pred_region
    _
  $region13: #{_lambda_.1} parent=0 // pred_fallthru
    _
  // Predicated region
  $region14: #{_lambda_.1} parent=0 // pred_check
    _
  $region15: #{_lambda_.1} parent=0 // pred_check_branch
    %21 = sbr.rel (0) target = $region17
  $region16: #{_lambda_.1} parent=0 // pred_region
    _
  $region17: #{_lambda_.1} parent=0 // pred_fallthru
    _
  // Predicated region
  $region18: #{_lambda_.1} parent=0 // pred_check
    _
  $region19: #{_lambda_.1} parent=0 // pred_check_branch
    %23 = sbr.rel (0) target = $region21
  $region20: #{_lambda_.1} parent=0 // pred_region
    _
  $region21: #{_lambda_.1} parent=0 // pred_fallthru
    _
  // Predicated region
  $region22: #{_lambda_.1} parent=0 // pred_check
    _
  $region23: #{_lambda_.1} parent=0 // pred_check_branch
    %25 = sbr.rel (0) target = $region25
  $region24: #{_lambda_.1} parent=0 // pred_region
    _
  $region25: #{_lambda_.1} parent=0 // pred_fallthru
    _
  // Predicated region
  $region26: #{_lambda_.1} parent=0 // pred_check
    _
  $region27: #{_lambda_.1} parent=0 // pred_check_branch
    %27 = sbr.rel (0) target = $region29
  $region28: #{_lambda_.1} parent=0 // pred_region
    _
  $region29: #{_lambda_.1} parent=0 // pred_fallthru
    _
  // Predicated region
  $region30: #{_lambda_.1} parent=0 // pred_check
    _
  $region31: #{_lambda_.1} parent=0 // pred_check_branch
    %29 = sbr.rel (0) target = $region33
  $region32: #{_lambda_.1} parent=0 // pred_region
    _
  $region33: #{_lambda_.1} parent=0 // pred_fallthru
    _
  // Predicated region
  $region34: #{_lambda_.1} parent=0 // pred_check
    _
  $region35: #{_lambda_.1} parent=0 // pred_check_branch
    %31 = sbr.rel (0) target = $region37
  $region36: #{_lambda_.1} parent=0 // pred_region
    _
  $region37: #{_lambda_.1} parent=0 // pred_fallthru
    _
  %v33 = vlaneseq
  %v34 = vand.u32 %v33, 127
  %v35 = vld [vmem:[%s0] sm:$0xff]
  %v36 = vld [vmem:[%s0 + $0x8] sm:$0xff]
  %v37 = vld [vmem:[%s0 + $0x10] sm:$0xff]
  %v38 = vld [vmem:[%s0 + $0x18] sm:$0xff]
  %v39 = vld [vmem:[%s0 + $0x20] sm:$0xff]
  %v40 = vld [vmem:[%s0 + $0x28] sm:$0xff]
  %v41 = vld [vmem:[%s0 + $0x30] sm:$0xff]
  %v42 = vld [vmem:[%s0 + $0x38] sm:$0xff]
  %43 = vset.pattern.permute.xlu0 0
  %44 = vperm.xlu0 %43, %v35
  %v45 = vpop.permute.xlu0 %44
  %46 = vset.pattern.permute.xlu0 0
  %47 = vperm.xlu0 %46, %v36
  %v48 = vpop.permute.xlu0 %47
  %49 = vset.pattern.permute.xlu0 0
  %50 = vperm.xlu0 %49, %v37
  %v51 = vpop.permute.xlu0 %50
  %52 = vset.pattern.permute.xlu0 0
  %53 = vperm.xlu0 %52, %v38
  %v54 = vpop.permute.xlu0 %53
  %55 = vset.pattern.permute.xlu0 0
  %56 = vperm.xlu0 %55, %v39
  %v57 = vpop.permute.xlu0 %56
  %58 = vset.pattern.permute.xlu0 0
  %59 = vperm.xlu0 %58, %v40
  %v60 = vpop.permute.xlu0 %59
  %61 = vset.pattern.permute.xlu0 0
  %62 = vperm.xlu0 %61, %v41
  %v63 = vpop.permute.xlu0 %62
  %64 = vset.pattern.permute.xlu0 0
  %65 = vperm.xlu0 %64, %v42
  %v66 = vpop.permute.xlu0 %65
  %vm67 = vcmp.eq.s32.totalorder %v34, %v45
  %vm68 = vcmp.eq.s32.totalorder %v34, %v48
  %vm69 = vcmp.eq.s32.totalorder %v34, %v51
  %vm70 = vcmp.eq.s32.totalorder %v34, %v54
  %vm71 = vcmp.eq.s32.totalorder %v34, %v57
  %vm72 = vcmp.eq.s32.totalorder %v34, %v60
  %vm73 = vcmp.eq.s32.totalorder %v34, %v63
  %vm74 = vcmp.eq.s32.totalorder %v34, %v66
  %v75 = vsel %vm67, 1.0, 0.0
  %v76 = vsel %vm68, 1.0, 0.0
  %v77 = vsel %vm69, 1.0, 0.0
  %v78 = vsel %vm70, 1.0, 0.0
  %v79 = vsel %vm71, 1.0, 0.0
  %v80 = vsel %vm72, 1.0, 0.0
  %v81 = vsel %vm73, 1.0, 0.0
  %v82 = vsel %vm74, 1.0, 0.0
  %v83 = vpack.c.bf16 %v76, %v75
  %v84 = vpack.c.bf16 %v78, %v77
  %v85 = vpack.c.bf16 %v80, %v79
  %v86 = vpack.c.bf16 %v82, %v81
  %v87 = vld [vmem:[%s1] sm:$0xf]
  %v88 = vld [vmem:[%s1 + $0x4] sm:$0xf]
  %v89 = vld [vmem:[%s3] sm:$0x1]
  %v91 = vlaneseq
  %v92 = vshrl.u32 %v91, 7
  %v93 = vsub.s32 0, %v92
  %v94 = vrot.slane %v89, %v93
  %v98 = vunpack.c.l.b16 %v87
  %v99 = vunpack.c.l.b16 %v88
  %v100 = vpack.c.b16 %v99, %v98
  %vm102 = vcmask 130048
  %v104 = vsel %vm102, %v83, 0
  %v107 = vsel %vm102, %v84, 0
  %v110 = vsel %vm102, %v85, 0
  %v113 = vsel %vm102, %v86, 0
  %115 = vmatprep.subr.bf16.mxu0 0
  %116 = vmatpush1.bf16.msra.mxu0 %v100
  %117 = vmatprep.subr.bf16.mxu0 0
  %118 = vmatpush1.bf16.msra.mxu0 0
  %119 = vmatprep.subr.bf16.mxu0 0
  %120 = vmatpush1.bf16.msra.mxu0 0
  %121 = vmatprep.subr.bf16.mxu0 0
  %122 = vmatpush1.bf16.msra.mxu0 0
  %123 = vmatprep.subr.bf16.mxu0 0
  %124 = vmatpush1.bf16.msra.mxu0 0
  %125 = vmatprep.subr.bf16.mxu0 0
  %126 = vmatpush1.bf16.msra.mxu0 0
  %127 = vmatprep.subr.bf16.mxu0 0
  %128 = vmatpush1.bf16.msra.mxu0 0
  %129 = vmatprep.subr.bf16.mxu0 0
  %130 = vmatpush1.bf16.msra.mxu0 0
  %131 = vmatprep.subr.bf16.mxu0 0
  %132 = vmatpush1.bf16.msra.mxu0 0
  %133 = vmatprep.subr.bf16.mxu0 0
  %134 = vmatpush1.bf16.msra.mxu0 0
  %135 = vmatprep.subr.bf16.mxu0 0
  %136 = vmatpush1.bf16.msra.mxu0 0
  %137 = vmatprep.subr.bf16.mxu0 0
  %138 = vmatpush1.bf16.msra.mxu0 0
  %139 = vmatprep.subr.bf16.mxu0 0
  %140 = vmatpush1.bf16.msra.mxu0 0
  %141 = vmatprep.subr.bf16.mxu0 0
  %142 = vmatpush1.bf16.msra.mxu0 0
  %143 = vmatprep.subr.bf16.mxu0 0
  %144 = vmatpush1.bf16.msra.mxu0 0
  %145 = vmatprep.subr.bf16.mxu0 0
  %146 = vmatpush1.bf16.msra.mxu0 0
  %147 = vmatprep.mubr.bf16.mxu0 0
  %148 = vmatmul.mubr.bf16.gmra.mrb[0].mxu0 %v104
  %v149 = vpop.f32.mrb[0].mxu0
  %v150 = vadd.f32 %v94, %v149
  %v151 = vpop.f32.mrb[0].mxu0
  %v152 = vpop.f32.mrb[0].mxu0
  %v153 = vadd.f32 %v94, %v152
  %v154 = vpop.f32.mrb[0].mxu0
  %155 = vmatprep.mubr.bf16.mxu0 0
  %156 = vmatmul.mubr.bf16.gmra.mrb[0].mxu0 %v107
  %v157 = vpop.f32.mrb[0].mxu0
  %v158 = vadd.f32 %v94, %v157
  %v159 = vpop.f32.mrb[0].mxu0
  %v160 = vpop.f32.mrb[0].mxu0
  %v161 = vadd.f32 %v94, %v160
  %v162 = vpop.f32.mrb[0].mxu0
  %163 = vmatprep.mubr.bf16.mxu0 0
  %164 = vmatmul.mubr.bf16.gmra.mrb[0].mxu0 %v110
  %v165 = vpop.f32.mrb[0].mxu0
  %v166 = vadd.f32 %v94, %v165
  %v167 = vpop.f32.mrb[0].mxu0
  %v168 = vpop.f32.mrb[0].mxu0
  %v169 = vadd.f32 %v94, %v168
  %v170 = vpop.f32.mrb[0].mxu0
  %171 = vmatprep.mubr.bf16.mxu0 0
  %172 = vmatmul.mubr.bf16.gmra.mrb[0].mxu0 %v113
  %v173 = vpop.f32.mrb[0].mxu0
  %v174 = vadd.f32 %v94, %v173
  %v175 = vpop.f32.mrb[0].mxu0
  %v176 = vpop.f32.mrb[0].mxu0
  %v177 = vadd.f32 %v94, %v176
  %v178 = vpop.f32.mrb[0].mxu0
  %179 = vdwg.mxu0
  %v180 = vld [vmem:[%s4] sm:$0xf]
  %v181 = vld [vmem:[%s4 + $0x4] sm:$0xf]
  %v182 = vld [vmem:[%s4 + $0x8] sm:$0xf]
  %v183 = vld [vmem:[%s4 + $0xc] sm:$0xf]
  %v184 = vld [vmem:[%s2] sm:$0xf]
  %v185 = vld [vmem:[%s2 + $0x4] sm:$0xf]
  %v186 = vld [vmem:[%s2 + $0x8] sm:$0xf]
  %v187 = vld [vmem:[%s2 + $0xc] sm:$0xf]
  %v188 = vld [vmem:[%s5] sm:$0xf]
  %v189 = vld [vmem:[%s5 + $0x4] sm:$0xf]
  %v190 = vld [vmem:[%s5 + $0x8] sm:$0xf]
  %v191 = vld [vmem:[%s5 + $0xc] sm:$0xf]
  %v192 = vld [vmem:[%s6] sm:$0x1]
  %v194 = vlaneseq
  %v195 = vshrl.u32 %v194, 7
  %v196 = vsub.s32 0, %v195
  %v197 = vrot.slane %v192, %v196
  %v203 = vunpack.c.l.b16 %v184
  %v204 = vunpack.c.l.b16 %v185
  %v205 = vunpack.c.l.b16 %v186
  %v206 = vunpack.c.l.b16 %v187
  %v207 = vpack.c.b16 %v204, %v203
  %v208 = vpack.c.b16 %v206, %v205
  %vm211 = vcmask 261120
  %v213 = vsel %vm211, 0, 0
  %215 = vmatprep.subr.bf16.mxu0 0
  %216 = vmatpush1.bf16.msra.mxu0 %v207
  %217 = vmatprep.subr.bf16.mxu0 0
  %218 = vmatpush1.bf16.msra.mxu0 %v208
  %219 = vmatprep.subr.bf16.mxu0 0
  %220 = vmatpush1.bf16.msra.mxu0 0
  %221 = vmatprep.subr.bf16.mxu0 0
  %222 = vmatpush1.bf16.msra.mxu0 0
  %223 = vmatprep.subr.bf16.mxu0 0
  %224 = vmatpush1.bf16.msra.mxu0 0
  %225 = vmatprep.subr.bf16.mxu0 0
  %226 = vmatpush1.bf16.msra.mxu0 0
  %227 = vmatprep.subr.bf16.mxu0 0
  %228 = vmatpush1.bf16.msra.mxu0 0
  %229 = vmatprep.subr.bf16.mxu0 0
  %230 = vmatpush1.bf16.msra.mxu0 0
  %231 = vmatprep.subr.bf16.mxu0 0
  %232 = vmatpush1.bf16.msra.mxu0 0
  %233 = vmatprep.subr.bf16.mxu0 0
  %234 = vmatpush1.bf16.msra.mxu0 0
  %235 = vmatprep.subr.bf16.mxu0 0
  %236 = vmatpush1.bf16.msra.mxu0 0
  %237 = vmatprep.subr.bf16.mxu0 0
  %238 = vmatpush1.bf16.msra.mxu0 0
  %239 = vmatprep.subr.bf16.mxu0 0
  %240 = vmatpush1.bf16.msra.mxu0 0
  %241 = vmatprep.subr.bf16.mxu0 0
  %242 = vmatpush1.bf16.msra.mxu0 0
  %243 = vmatprep.subr.bf16.mxu0 0
  %244 = vmatpush1.bf16.msra.mxu0 0
  %245 = vmatprep.subr.bf16.mxu0 0
  %246 = vmatpush1.bf16.msra.mxu0 0
  %247 = vmatprep.mubr.bf16.mxu0 0
  %248 = vmatmul.mubr.bf16.gmra.mrb[0].mxu0 %v213
  %v249 = vpop.f32.mrb[0].mxu0
  %v250 = vadd.f32 0.0, %v249
  %v251 = vpop.f32.mrb[0].mxu0
  %v252 = vpop.f32.mrb[0].mxu0
  %v253 = vpop.f32.mrb[0].mxu0
  %254 = vdwg.mxu0
  %v255 = vadd.f32 %v150, %v250
  %v256 = vxor.u32 %v255, 2147483648
  %v257 = vmul.f32 %v256, 1.442695
  %v258 = vpow.pop %v257
  %v259 = vadd.f32 %v258, 1.0
  %v260 = vrcp.pop %v259
  %v261 = vmul.f32 1.0, %v260
  %v262 = vtanh.pop %v255
  %v263 = vmul.f32 %v261, 0.0
  %265 = vrot.lane.b32.xlu0 %v262, 64
  %v266 = vpop.permute.xlu0 %265
  %v268 = vmul.f32 %v261, %v266
  %270 = vrot.lane.b32.xlu0 %v268, 32
  %v271 = vpop.permute.xlu0 %270
  %v273 = vadd.f32 %v263, %v271
  %v274 = vtanh.pop %v273
  %276 = vrot.lane.b32.xlu0 %v274, 64
  %v277 = vpop.permute.xlu0 %276
  %v279 = vmul.f32 %v261, %v277
  %v280 = vpack.c.bf16 %v279, %v279
  %282 = vrot.lane.b32.xlu0 %v280, 32
  %v283 = vpop.permute.xlu0 %282
  %v285 = vsel %vm211, %v283, 0
  %287 = vmatprep.subr.bf16.mxu0 0
  %288 = vmatpush1.bf16.msra.mxu0 %v207
  %289 = vmatprep.subr.bf16.mxu0 0
  %290 = vmatpush1.bf16.msra.mxu0 %v208
  %291 = vmatprep.subr.bf16.mxu0 0
  %292 = vmatpush1.bf16.msra.mxu0 0
  %293 = vmatprep.subr.bf16.mxu0 0
  %294 = vmatpush1.bf16.msra.mxu0 0
  %295 = vmatprep.subr.bf16.mxu0 0
  %296 = vmatpush1.bf16.msra.mxu0 0
  %297 = vmatprep.subr.bf16.mxu0 0
  %298 = vmatpush1.bf16.msra.mxu0 0
  %299 = vmatprep.subr.bf16.mxu0 0
  %300 = vmatpush1.bf16.msra.mxu0 0
  %301 = vmatprep.subr.bf16.mxu0 0
  %302 = vmatpush1.bf16.msra.mxu0 0
  %303 = vmatprep.subr.bf16.mxu0 0
  %304 = vmatpush1.bf16.msra.mxu0 0
  %305 = vmatprep.subr.bf16.mxu0 0
  %306 = vmatpush1.bf16.msra.mxu0 0
  %307 = vmatprep.subr.bf16.mxu0 0
  %308 = vmatpush1.bf16.msra.mxu0 0
  %309 = vmatprep.subr.bf16.mxu0 0
  %310 = vmatpush1.bf16.msra.mxu0 0
  %311 = vmatprep.subr.bf16.mxu0 0
  %312 = vmatpush1.bf16.msra.mxu0 0
  %313 = vmatprep.subr.bf16.mxu0 0
  %314 = vmatpush1.bf16.msra.mxu0 0
  %315 = vmatprep.subr.bf16.mxu0 0
  %316 = vmatpush1.bf16.msra.mxu0 0
  %317 = vmatprep.subr.bf16.mxu0 0
  %318 = vmatpush1.bf16.msra.mxu0 0
  %319 = vmatprep.mubr.bf16.mxu0 0
  %320 = vmatmul.mubr.bf16.gmra.mrb[0].mxu0 %v285
  %v321 = vpop.f32.mrb[0].mxu0
  %v322 = vadd.f32 0.0, %v321
  %v323 = vpop.f32.mrb[0].mxu0
  %v324 = vpop.f32.mrb[0].mxu0
  %v325 = vpop.f32.mrb[0].mxu0
  %326 = vdwg.mxu0
  %v327 = vadd.f32 %v153, %v322
  %v328 = vxor.u32 %v327, 2147483648
  %v329 = vmul.f32 %v328, 1.442695
  %v330 = vpow.pop %v329
  %v331 = vadd.f32 %v330, 1.0
  %v332 = vrcp.pop %v331
  %v333 = vmul.f32 1.0, %v332
  %v334 = vtanh.pop %v327
  %v335 = vmul.f32 %v333, %v273
  %337 = vrot.lane.b32.xlu0 %v334, 64
  %v338 = vpop.permute.xlu0 %337
  %v340 = vmul.f32 %v333, %v338
  %342 = vrot.lane.b32.xlu0 %v340, 32
  %v343 = vpop.permute.xlu0 %342
  %v345 = vadd.f32 %v335, %v343
  %v346 = vtanh.pop %v345
  %348 = vrot.lane.b32.xlu0 %v346, 64
  %v349 = vpop.permute.xlu0 %348
  %v351 = vmul.f32 %v333, %v349
  %v352 = vpack.c.bf16 %v351, %v351
  %v357 = vunpack.c.l.b16 %v188
  %v358 = vunpack.c.l.b16 %v189
  %v359 = vunpack.c.l.b16 %v190
  %v360 = vunpack.c.l.b16 %v191
  %v361 = vpack.c.b16 %v358, %v357
  %v362 = vpack.c.b16 %v360, %v359
  %365 = vmatprep.subr.bf16.mxu0 0
  %366 = vmatpush1.bf16.msra.mxu0 %v361
  %367 = vmatprep.subr.bf16.mxu0 0
  %368 = vmatpush1.bf16.msra.mxu0 %v362
  %369 = vmatprep.subr.bf16.mxu0 0
  %370 = vmatpush1.bf16.msra.mxu0 0
  %371 = vmatprep.subr.bf16.mxu0 0
  %372 = vmatpush1.bf16.msra.mxu0 0
  %373 = vmatprep.subr.bf16.mxu0 0
  %374 = vmatpush1.bf16.msra.mxu0 0
  %375 = vmatprep.subr.bf16.mxu0 0
  %376 = vmatpush1.bf16.msra.mxu0 0
  %377 = vmatprep.subr.bf16.mxu0 0
  %378 = vmatpush1.bf16.msra.mxu0 0
  %379 = vmatprep.subr.bf16.mxu0 0
  %380 = vmatpush1.bf16.msra.mxu0 0
  %381 = vmatprep.subr.bf16.mxu0 0
  %382 = vmatpush1.bf16.msra.mxu0 0
  %383 = vmatprep.subr.bf16.mxu0 0
  %384 = vmatpush1.bf16.msra.mxu0 0
  %385 = vmatprep.subr.bf16.mxu0 0
  %386 = vmatpush1.bf16.msra.mxu0 0
  %387 = vmatprep.subr.bf16.mxu0 0
  %388 = vmatpush1.bf16.msra.mxu0 0
  %389 = vmatprep.subr.bf16.mxu0 0
  %390 = vmatpush1.bf16.msra.mxu0 0
  %391 = vmatprep.subr.bf16.mxu0 0
  %392 = vmatpush1.bf16.msra.mxu0 0
  %393 = vmatprep.subr.bf16.mxu0 0
  %394 = vmatpush1.bf16.msra.mxu0 0
  %395 = vmatprep.subr.bf16.mxu0 0
  %396 = vmatpush1.bf16.msra.mxu0 0
  %397 = vmatprep.mubr.bf16.mxu0 0
  %398 = vmatmul.mubr.bf16.gmra.mrb[0].mxu0 %v213
  %v399 = vpop.f32.mrb[0].mxu0
  %v400 = vadd.f32 0.0, %v399
  %v401 = vpop.f32.mrb[0].mxu0
  %v402 = vpop.f32.mrb[0].mxu0
  %v403 = vpop.f32.mrb[0].mxu0
  %404 = vdwg.mxu0
  %v409 = vunpack.c.l.b16 %v180
  %v410 = vunpack.c.l.b16 %v181
  %v411 = vunpack.c.l.b16 %v182
  %v412 = vunpack.c.l.b16 %v183
  %v413 = vpack.c.b16 %v410, %v409
  %v414 = vpack.c.b16 %v412, %v411
  %417 = vmatprep.subr.bf16.mxu0 0
  %418 = vmatpush1.bf16.msra.mxu0 %v413
  %419 = vmatprep.subr.bf16.mxu0 0
  %420 = vmatpush1.bf16.msra.mxu0 %v414
  %421 = vmatprep.subr.bf16.mxu0 0
  %422 = vmatpush1.bf16.msra.mxu0 0
  %423 = vmatprep.subr.bf16.mxu0 0
  %424 = vmatpush1.bf16.msra.mxu0 0
  %425 = vmatprep.subr.bf16.mxu0 0
  %426 = vmatpush1.bf16.msra.mxu0 0
  %427 = vmatprep.subr.bf16.mxu0 0
  %428 = vmatpush1.bf16.msra.mxu0 0
  %429 = vmatprep.subr.bf16.mxu0 0
  %430 = vmatpush1.bf16.msra.mxu0 0
  %431 = vmatprep.subr.bf16.mxu0 0
  %432 = vmatpush1.bf16.msra.mxu0 0
  %433 = vmatprep.subr.bf16.mxu0 0
  %434 = vmatpush1.bf16.msra.mxu0 0
  %435 = vmatprep.subr.bf16.mxu0 0
  %436 = vmatpush1.bf16.msra.mxu0 0
  %437 = vmatprep.subr.bf16.mxu0 0
  %438 = vmatpush1.bf16.msra.mxu0 0
  %439 = vmatprep.subr.bf16.mxu0 0
  %440 = vmatpush1.bf16.msra.mxu0 0
  %441 = vmatprep.subr.bf16.mxu0 0
  %442 = vmatpush1.bf16.msra.mxu0 0
  %443 = vmatprep.subr.bf16.mxu0 0
  %444 = vmatpush1.bf16.msra.mxu0 0
  %445 = vmatprep.subr.bf16.mxu0 0
  %446 = vmatpush1.bf16.msra.mxu0 0
  %447 = vmatprep.subr.bf16.mxu0 0
  %448 = vmatpush1.bf16.msra.mxu0 0
  %449 = vmatprep.mubr.bf16.mxu0 0
  %450 = vmatmul.mubr.bf16.gmra.mrb[0].mxu0 %v285
  %v451 = vpop.f32.mrb[0].mxu0
  %v452 = vadd.f32 %v400, %v451
  %v453 = vpop.f32.mrb[0].mxu0
  %v454 = vpop.f32.mrb[0].mxu0
  %v455 = vpop.f32.mrb[0].mxu0
  %456 = vdwg.mxu0
  %v457 = vadd.f32 %v452, %v197
  %v458 = vxor.u32 %v457, 2147483648
  %v459 = vmul.f32 %v458, 1.442695
  %v460 = vpow.pop %v459
  %v461 = vadd.f32 %v460, 1.0
  %v462 = vrcp.pop %v461
  %v463 = vmul.f32 1.0, %v462
  %v464 = vtanh.pop %v457
  %v465 = vmul.f32 %v463, 0.0
  %467 = vrot.lane.b32.xlu0 %v464, 64
  %v468 = vpop.permute.xlu0 %467
  %v470 = vmul.f32 %v463, %v468
  %472 = vrot.lane.b32.xlu0 %v470, 32
  %v473 = vpop.permute.xlu0 %472
  %v475 = vadd.f32 %v465, %v473
  %v476 = vtanh.pop %v475
  %478 = vrot.lane.b32.xlu0 %v476, 64
  %v479 = vpop.permute.xlu0 %478
  %v481 = vmul.f32 %v463, %v479
  %v482 = vpack.c.bf16 %v481, %v481
  %484 = vrot.lane.b32.xlu0 %v482, 32
  %v485 = vpop.permute.xlu0 %484
  %vm487 = vcmask 257024
  %488 = vst.msk [vmem:[#allocation2] sm:$0xf] %vm487, %v485
  %490 = vrot.lane.b32.xlu0 %v352, 32
  %v491 = vpop.permute.xlu0 %490
  %v493 = vsel %vm211, %v491, 0
  %495 = vmatprep.subr.bf16.mxu0 0
  %496 = vmatpush1.bf16.msra.mxu0 %v207
  %497 = vmatprep.subr.bf16.mxu0 0
  %498 = vmatpush1.bf16.msra.mxu0 %v208
  %499 = vmatprep.subr.bf16.mxu0 0
  %500 = vmatpush1.bf16.msra.mxu0 0
  %501 = vmatprep.subr.bf16.mxu0 0
  %502 = vmatpush1.bf16.msra.mxu0 0
  %503 = vmatprep.subr.bf16.mxu0 0
  %504 = vmatpush1.bf16.msra.mxu0 0
  %505 = vmatprep.subr.bf16.mxu0 0
  %506 = vmatpush1.bf16.msra.mxu0 0
  %507 = vmatprep.subr.bf16.mxu0 0
  %508 = vmatpush1.bf16.msra.mxu0 0
  %509 = vmatprep.subr.bf16.mxu0 0
  %510 = vmatpush1.bf16.msra.mxu0 0
  %511 = vmatprep.subr.bf16.mxu0 0
  %512 = vmatpush1.bf16.msra.mxu0 0
  %513 = vmatprep.subr.bf16.mxu0 0
  %514 = vmatpush1.bf16.msra.mxu0 0
  %515 = vmatprep.subr.bf16.mxu0 0
  %516 = vmatpush1.bf16.msra.mxu0 0
  %517 = vmatprep.subr.bf16.mxu0 0
  %518 = vmatpush1.bf16.msra.mxu0 0
  %519 = vmatprep.subr.bf16.mxu0 0
  %520 = vmatpush1.bf16.msra.mxu0 0
  %521 = vmatprep.subr.bf16.mxu0 0
  %522 = vmatpush1.bf16.msra.mxu0 0
  %523 = vmatprep.subr.bf16.mxu0 0
  %524 = vmatpush1.bf16.msra.mxu0 0
  %525 = vmatprep.subr.bf16.mxu0 0
  %526 = vmatpush1.bf16.msra.mxu0 0
  %527 = vmatprep.mubr.bf16.mxu0 0
  %528 = vmatmul.mubr.bf16.gmra.mrb[0].mxu0 %v493
  %v529 = vpop.f32.mrb[0].mxu0
  %v530 = vadd.f32 0.0, %v529
  %v531 = vpop.f32.mrb[0].mxu0
  %v532 = vpop.f32.mrb[0].mxu0
  %v533 = vpop.f32.mrb[0].mxu0
  %534 = vdwg.mxu0
  %v535 = vadd.f32 %v158, %v530
  %v536 = vxor.u32 %v535, 2147483648
  %v537 = vmul.f32 %v536, 1.442695
  %v538 = vpow.pop %v537
  %v539 = vadd.f32 %v538, 1.0
  %v540 = vrcp.pop %v539
  %v541 = vmul.f32 1.0, %v540
  %v542 = vtanh.pop %v535
  %v543 = vmul.f32 %v541, %v345
  %545 = vrot.lane.b32.xlu0 %v542, 64
  %v546 = vpop.permute.xlu0 %545
  %v548 = vmul.f32 %v541, %v546
  %550 = vrot.lane.b32.xlu0 %v548, 32
  %v551 = vpop.permute.xlu0 %550
  %v553 = vadd.f32 %v543, %v551
  %v554 = vtanh.pop %v553
  %556 = vrot.lane.b32.xlu0 %v554, 64
  %v557 = vpop.permute.xlu0 %556
  %v559 = vmul.f32 %v541, %v557
  %v560 = vpack.c.bf16 %v559, %v559
  %v562 = vsel %vm211, %v485, 0
  %564 = vmatprep.subr.bf16.mxu0 0
  %565 = vmatpush1.bf16.msra.mxu0 %v361
  %566 = vmatprep.subr.bf16.mxu0 0
  %567 = vmatpush1.bf16.msra.mxu0 %v362
  %568 = vmatprep.subr.bf16.mxu0 0
  %569 = vmatpush1.bf16.msra.mxu0 0
  %570 = vmatprep.subr.bf16.mxu0 0
  %571 = vmatpush1.bf16.msra.mxu0 0
  %572 = vmatprep.subr.bf16.mxu0 0
  %573 = vmatpush1.bf16.msra.mxu0 0
  %574 = vmatprep.subr.bf16.mxu0 0
  %575 = vmatpush1.bf16.msra.mxu0 0
  %576 = vmatprep.subr.bf16.mxu0 0
  %577 = vmatpush1.bf16.msra.mxu0 0
  %578 = vmatprep.subr.bf16.mxu0 0
  %579 = vmatpush1.bf16.msra.mxu0 0
  %580 = vmatprep.subr.bf16.mxu0 0
  %581 = vmatpush1.bf16.msra.mxu0 0
  %582 = vmatprep.subr.bf16.mxu0 0
  %583 = vmatpush1.bf16.msra.mxu0 0
  %584 = vmatprep.subr.bf16.mxu0 0
  %585 = vmatpush1.bf16.msra.mxu0 0
  %586 = vmatprep.subr.bf16.mxu0 0
  %587 = vmatpush1.bf16.msra.mxu0 0
  %588 = vmatprep.subr.bf16.mxu0 0
  %589 = vmatpush1.bf16.msra.mxu0 0
  %590 = vmatprep.subr.bf16.mxu0 0
  %591 = vmatpush1.bf16.msra.mxu0 0
  %592 = vmatprep.subr.bf16.mxu0 0
  %593 = vmatpush1.bf16.msra.mxu0 0
  %594 = vmatprep.subr.bf16.mxu0 0
  %595 = vmatpush1.bf16.msra.mxu0 0
  %596 = vmatprep.mubr.bf16.mxu0 0
  %597 = vmatmul.mubr.bf16.gmra.mrb[0].mxu0 %v562
  %v598 = vpop.f32.mrb[0].mxu0
  %v599 = vadd.f32 0.0, %v598
  %v600 = vpop.f32.mrb[0].mxu0
  %v601 = vpop.f32.mrb[0].mxu0
  %v602 = vpop.f32.mrb[0].mxu0
  %603 = vdwg.mxu0
  %604 = vmatprep.subr.bf16.mxu0 0
  %605 = vmatpush1.bf16.msra.mxu0 %v413
  %606 = vmatprep.subr.bf16.mxu0 0
  %607 = vmatpush1.bf16.msra.mxu0 %v414
  %608 = vmatprep.subr.bf16.mxu0 0
  %609 = vmatpush1.bf16.msra.mxu0 0
  %610 = vmatprep.subr.bf16.mxu0 0
  %611 = vmatpush1.bf16.msra.mxu0 0
  %612 = vmatprep.subr.bf16.mxu0 0
  %613 = vmatpush1.bf16.msra.mxu0 0
  %614 = vmatprep.subr.bf16.mxu0 0
  %615 = vmatpush1.bf16.msra.mxu0 0
  %616 = vmatprep.subr.bf16.mxu0 0
  %617 = vmatpush1.bf16.msra.mxu0 0
  %618 = vmatprep.subr.bf16.mxu0 0
  %619 = vmatpush1.bf16.msra.mxu0 0
  %620 = vmatprep.subr.bf16.mxu0 0
  %621 = vmatpush1.bf16.msra.mxu0 0
  %622 = vmatprep.subr.bf16.mxu0 0
  %623 = vmatpush1.bf16.msra.mxu0 0
  %624 = vmatprep.subr.bf16.mxu0 0
  %625 = vmatpush1.bf16.msra.mxu0 0
  %626 = vmatprep.subr.bf16.mxu0 0
  %627 = vmatpush1.bf16.msra.mxu0 0
  %628 = vmatprep.subr.bf16.mxu0 0
  %629 = vmatpush1.bf16.msra.mxu0 0
  %630 = vmatprep.subr.bf16.mxu0 0
  %631 = vmatpush1.bf16.msra.mxu0 0
  %632 = vmatprep.subr.bf16.mxu0 0
  %633 = vmatpush1.bf16.msra.mxu0 0
  %634 = vmatprep.subr.bf16.mxu0 0
  %635 = vmatpush1.bf16.msra.mxu0 0
  %636 = vmatprep.mubr.bf16.mxu0 0
  %637 = vmatmul.mubr.bf16.gmra.mrb[0].mxu0 %v493
  %v638 = vpop.f32.mrb[0].mxu0
  %v639 = vadd.f32 %v599, %v638
  %v640 = vpop.f32.mrb[0].mxu0
  %v641 = vpop.f32.mrb[0].mxu0
  %v642 = vpop.f32.mrb[0].mxu0
  %643 = vdwg.mxu0
  %v644 = vadd.f32 %v639, %v197
  %v645 = vxor.u32 %v644, 2147483648
  %v646 = vmul.f32 %v645, 1.442695
  %v647 = vpow.pop %v646
  %v648 = vadd.f32 %v647, 1.0
  %v649 = vrcp.pop %v648
  %v650 = vmul.f32 1.0, %v649
  %v651 = vtanh.pop %v644
  %v652 = vmul.f32 %v650, %v475
  %654 = vrot.lane.b32.xlu0 %v651, 64
  %v655 = vpop.permute.xlu0 %654
  %v657 = vmul.f32 %v650, %v655
  %659 = vrot.lane.b32.xlu0 %v657, 32
  %v660 = vpop.permute.xlu0 %659
  %v662 = vadd.f32 %v652, %v660
  %v663 = vtanh.pop %v662
  %665 = vrot.lane.b32.xlu0 %v663, 64
  %v666 = vpop.permute.xlu0 %665
  %v668 = vmul.f32 %v650, %v666
  %v669 = vpack.c.bf16 %v668, %v668
  %v671 = vrot.slane %v669, 4
  %672 = vrot.lane.b32.xlu0 %v671, 32
  %v673 = vpop.permute.xlu0 %672
  %vm675 = vcmask 261124
  %676 = vst.msk [vmem:[#allocation2] sm:$0xf0] %vm675, %v673
  %678 = vrot.lane.b32.xlu0 %v560, 32
  %v679 = vpop.permute.xlu0 %678
  %v681 = vsel %vm211, %v679, 0
  %683 = vmatprep.subr.bf16.mxu0 0
  %684 = vmatpush1.bf16.msra.mxu0 %v207
  %685 = vmatprep.subr.bf16.mxu0 0
  %686 = vmatpush1.bf16.msra.mxu0 %v208
  %687 = vmatprep.subr.bf16.mxu0 0
  %688 = vmatpush1.bf16.msra.mxu0 0
  %689 = vmatprep.subr.bf16.mxu0 0
  %690 = vmatpush1.bf16.msra.mxu0 0
  %691 = vmatprep.subr.bf16.mxu0 0
  %692 = vmatpush1.bf16.msra.mxu0 0
  %693 = vmatprep.subr.bf16.mxu0 0
  %694 = vmatpush1.bf16.msra.mxu0 0
  %695 = vmatprep.subr.bf16.mxu0 0
  %696 = vmatpush1.bf16.msra.mxu0 0
  %697 = vmatprep.subr.bf16.mxu0 0
  %698 = vmatpush1.bf16.msra.mxu0 0
  %699 = vmatprep.subr.bf16.mxu0 0
  %700 = vmatpush1.bf16.msra.mxu0 0
  %701 = vmatprep.subr.bf16.mxu0 0
  %702 = vmatpush1.bf16.msra.mxu0 0
  %703 = vmatprep.subr.bf16.mxu0 0
  %704 = vmatpush1.bf16.msra.mxu0 0
  %705 = vmatprep.subr.bf16.mxu0 0
  %706 = vmatpush1.bf16.msra.mxu0 0
  %707 = vmatprep.subr.bf16.mxu0 0
  %708 = vmatpush1.bf16.msra.mxu0 0
  %709 = vmatprep.subr.bf16.mxu0 0
  %710 = vmatpush1.bf16.msra.mxu0 0
  %711 = vmatprep.subr.bf16.mxu0 0
  %712 = vmatpush1.bf16.msra.mxu0 0
  %713 = vmatprep.subr.bf16.mxu0 0
  %714 = vmatpush1.bf16.msra.mxu0 0
  %715 = vmatprep.mubr.bf16.mxu0 0
  %716 = vmatmul.mubr.bf16.gmra.mrb[0].mxu0 %v681
  %v717 = vpop.f32.mrb[0].mxu0
  %v718 = vadd.f32 0.0, %v717
  %v719 = vpop.f32.mrb[0].mxu0
  %v720 = vpop.f32.mrb[0].mxu0
  %v721 = vpop.f32.mrb[0].mxu0
  %722 = vdwg.mxu0
  %v723 = vadd.f32 %v161, %v718
  %v724 = vxor.u32 %v723, 2147483648
  %v725 = vmul.f32 %v724, 1.442695
  %v726 = vpow.pop %v725
  %v727 = vadd.f32 %v726, 1.0
  %v728 = vrcp.pop %v727
  %v729 = vmul.f32 1.0, %v728
  %v730 = vtanh.pop %v723
  %v731 = vmul.f32 %v729, %v553
  %733 = vrot.lane.b32.xlu0 %v730, 64
  %v734 = vpop.permute.xlu0 %733
  %v736 = vmul.f32 %v729, %v734
  %738 = vrot.lane.b32.xlu0 %v736, 32
  %v739 = vpop.permute.xlu0 %738
  %v741 = vadd.f32 %v731, %v739
  %v742 = vtanh.pop %v741
  %744 = vrot.lane.b32.xlu0 %v742, 64
  %v745 = vpop.permute.xlu0 %744
  %v747 = vmul.f32 %v729, %v745
  %v748 = vpack.c.bf16 %v747, %v747
  %749 = vrot.lane.b32.xlu0 %v669, 32
  %v750 = vpop.permute.xlu0 %749
  %v752 = vsel %vm211, %v750, 0
  %754 = vmatprep.subr.bf16.mxu0 0
  %755 = vmatpush1.bf16.msra.mxu0 %v361
  %756 = vmatprep.subr.bf16.mxu0 0
  %757 = vmatpush1.bf16.msra.mxu0 %v362
  %758 = vmatprep.subr.bf16.mxu0 0
  %759 = vmatpush1.bf16.msra.mxu0 0
  %760 = vmatprep.subr.bf16.mxu0 0
  %761 = vmatpush1.bf16.msra.mxu0 0
  %762 = vmatprep.subr.bf16.mxu0 0
  %763 = vmatpush1.bf16.msra.mxu0 0
  %764 = vmatprep.subr.bf16.mxu0 0
  %765 = vmatpush1.bf16.msra.mxu0 0
  %766 = vmatprep.subr.bf16.mxu0 0
  %767 = vmatpush1.bf16.msra.mxu0 0
  %768 = vmatprep.subr.bf16.mxu0 0
  %769 = vmatpush1.bf16.msra.mxu0 0
  %770 = vmatprep.subr.bf16.mxu0 0
  %771 = vmatpush1.bf16.msra.mxu0 0
  %772 = vmatprep.subr.bf16.mxu0 0
  %773 = vmatpush1.bf16.msra.mxu0 0
  %774 = vmatprep.subr.bf16.mxu0 0
  %775 = vmatpush1.bf16.msra.mxu0 0
  %776 = vmatprep.subr.bf16.mxu0 0
  %777 = vmatpush1.bf16.msra.mxu0 0
  %778 = vmatprep.subr.bf16.mxu0 0
  %779 = vmatpush1.bf16.msra.mxu0 0
  %780 = vmatprep.subr.bf16.mxu0 0
  %781 = vmatpush1.bf16.msra.mxu0 0
  %782 = vmatprep.subr.bf16.mxu0 0
  %783 = vmatpush1.bf16.msra.mxu0 0
  %784 = vmatprep.subr.bf16.mxu0 0
  %785 = vmatpush1.bf16.msra.mxu0 0
  %786 = vmatprep.mubr.bf16.mxu0 0
  %787 = vmatmul.mubr.bf16.gmra.mrb[0].mxu0 %v752
  %v788 = vpop.f32.mrb[0].mxu0
  %v789 = vadd.f32 0.0, %v788
  %v790 = vpop.f32.mrb[0].mxu0
  %v791 = vpop.f32.mrb[0].mxu0
  %v792 = vpop.f32.mrb[0].mxu0
  %793 = vdwg.mxu0
  %794 = vmatprep.subr.bf16.mxu0 0
  %795 = vmatpush1.bf16.msra.mxu0 %v413
  %796 = vmatprep.subr.bf16.mxu0 0
  %797 = vmatpush1.bf16.msra.mxu0 %v414
  %798 = vmatprep.subr.bf16.mxu0 0
  %799 = vmatpush1.bf16.msra.mxu0 0
  %800 = vmatprep.subr.bf16.mxu0 0
  %801 = vmatpush1.bf16.msra.mxu0 0
  %802 = vmatprep.subr.bf16.mxu0 0
  %803 = vmatpush1.bf16.msra.mxu0 0
  %804 = vmatprep.subr.bf16.mxu0 0
  %805 = vmatpush1.bf16.msra.mxu0 0
  %806 = vmatprep.subr.bf16.mxu0 0
  %807 = vmatpush1.bf16.msra.mxu0 0
  %808 = vmatprep.subr.bf16.mxu0 0
  %809 = vmatpush1.bf16.msra.mxu0 0
  %810 = vmatprep.subr.bf16.mxu0 0
  %811 = vmatpush1.bf16.msra.mxu0 0
  %812 = vmatprep.subr.bf16.mxu0 0
  %813 = vmatpush1.bf16.msra.mxu0 0
  %814 = vmatprep.subr.bf16.mxu0 0
  %815 = vmatpush1.bf16.msra.mxu0 0
  %816 = vmatprep.subr.bf16.mxu0 0
  %817 = vmatpush1.bf16.msra.mxu0 0
  %818 = vmatprep.subr.bf16.mxu0 0
  %819 = vmatpush1.bf16.msra.mxu0 0
  %820 = vmatprep.subr.bf16.mxu0 0
  %821 = vmatpush1.bf16.msra.mxu0 0
  %822 = vmatprep.subr.bf16.mxu0 0
  %823 = vmatpush1.bf16.msra.mxu0 0
  %824 = vmatprep.subr.bf16.mxu0 0
  %825 = vmatpush1.bf16.msra.mxu0 0
  %826 = vmatprep.mubr.bf16.mxu0 0
  %827 = vmatmul.mubr.bf16.gmra.mrb[0].mxu0 %v681
  %v828 = vpop.f32.mrb[0].mxu0
  %v829 = vadd.f32 %v789, %v828
  %v830 = vpop.f32.mrb[0].mxu0
  %v831 = vpop.f32.mrb[0].mxu0
  %v832 = vpop.f32.mrb[0].mxu0
  %833 = vdwg.mxu0
  %v834 = vadd.f32 %v829, %v197
  %v835 = vxor.u32 %v834, 2147483648
  %v836 = vmul.f32 %v835, 1.442695
  %v837 = vpow.pop %v836
  %v838 = vadd.f32 %v837, 1.0
  %v839 = vrcp.pop %v838
  %v840 = vmul.f32 1.0, %v839
  %v841 = vtanh.pop %v834
  %v842 = vmul.f32 %v840, %v662
  %844 = vrot.lane.b32.xlu0 %v841, 64
  %v845 = vpop.permute.xlu0 %844
  %v847 = vmul.f32 %v840, %v845
  %849 = vrot.lane.b32.xlu0 %v847, 32
  %v850 = vpop.permute.xlu0 %849
  %v852 = vadd.f32 %v842, %v850
  %v853 = vtanh.pop %v852
  %855 = vrot.lane.b32.xlu0 %v853, 64
  %v856 = vpop.permute.xlu0 %855
  %v858 = vmul.f32 %v840, %v856
  %v859 = vpack.c.bf16 %v858, %v858
  %861 = vrot.lane.b32.xlu0 %v859, 32
  %v862 = vpop.permute.xlu0 %861
  %864 = vst.msk [vmem:[#allocation2 + $0x8] sm:$0xf] %vm487, %v862
  %866 = vrot.lane.b32.xlu0 %v748, 32
  %v867 = vpop.permute.xlu0 %866
  %v869 = vsel %vm211, %v867, 0
  %871 = vmatprep.subr.bf16.mxu0 0
  %872 = vmatpush1.bf16.msra.mxu0 %v207
  %873 = vmatprep.subr.bf16.mxu0 0
  %874 = vmatpush1.bf16.msra.mxu0 %v208
  %875 = vmatprep.subr.bf16.mxu0 0
  %876 = vmatpush1.bf16.msra.mxu0 0
  %877 = vmatprep.subr.bf16.mxu0 0
  %878 = vmatpush1.bf16.msra.mxu0 0
  %879 = vmatprep.subr.bf16.mxu0 0
  %880 = vmatpush1.bf16.msra.mxu0 0
  %881 = vmatprep.subr.bf16.mxu0 0
  %882 = vmatpush1.bf16.msra.mxu0 0
  %883 = vmatprep.subr.bf16.mxu0 0
  %884 = vmatpush1.bf16.msra.mxu0 0
  %885 = vmatprep.subr.bf16.mxu0 0
  %886 = vmatpush1.bf16.msra.mxu0 0
  %887 = vmatprep.subr.bf16.mxu0 0
  %888 = vmatpush1.bf16.msra.mxu0 0
  %889 = vmatprep.subr.bf16.mxu0 0
  %890 = vmatpush1.bf16.msra.mxu0 0
  %891 = vmatprep.subr.bf16.mxu0 0
  %892 = vmatpush1.bf16.msra.mxu0 0
  %893 = vmatprep.subr.bf16.mxu0 0
  %894 = vmatpush1.bf16.msra.mxu0 0
  %895 = vmatprep.subr.bf16.mxu0 0
  %896 = vmatpush1.bf16.msra.mxu0 0
  %897 = vmatprep.subr.bf16.mxu0 0
  %898 = vmatpush1.bf16.msra.mxu0 0
  %899 = vmatprep.subr.bf16.mxu0 0
  %900 = vmatpush1.bf16.msra.mxu0 0
  %901 = vmatprep.subr.bf16.mxu0 0
  %902 = vmatpush1.bf16.msra.mxu0 0
  %903 = vmatprep.mubr.bf16.mxu0 0
  %904 = vmatmul.mubr.bf16.gmra.mrb[0].mxu0 %v869
  %v905 = vpop.f32.mrb[0].mxu0
  %v906 = vadd.f32 0.0, %v905
  %v907 = vpop.f32.mrb[0].mxu0
  %v908 = vpop.f32.mrb[0].mxu0
  %v909 = vpop.f32.mrb[0].mxu0
  %910 = vdwg.mxu0
  %v911 = vadd.f32 %v166, %v906
  %v912 = vxor.u32 %v911, 2147483648
  %v913 = vmul.f32 %v912, 1.442695
  %v914 = vpow.pop %v913
  %v915 = vadd.f32 %v914, 1.0
  %v916 = vrcp.pop %v915
  %v917 = vmul.f32 1.0, %v916
  %v918 = vtanh.pop %v911
  %v919 = vmul.f32 %v917, %v741
  %921 = vrot.lane.b32.xlu0 %v918, 64
  %v922 = vpop.permute.xlu0 %921
  %v924 = vmul.f32 %v917, %v922
  %926 = vrot.lane.b32.xlu0 %v924, 32
  %v927 = vpop.permute.xlu0 %926
  %v929 = vadd.f32 %v919, %v927
  %v930 = vtanh.pop %v929
  %932 = vrot.lane.b32.xlu0 %v930, 64
  %v933 = vpop.permute.xlu0 %932
  %v935 = vmul.f32 %v917, %v933
  %v936 = vpack.c.bf16 %v935, %v935
  %v938 = vsel %vm211, %v862, 0
  %940 = vmatprep.subr.bf16.mxu0 0
  %941 = vmatpush1.bf16.msra.mxu0 %v361
  %942 = vmatprep.subr.bf16.mxu0 0
  %943 = vmatpush1.bf16.msra.mxu0 %v362
  %944 = vmatprep.subr.bf16.mxu0 0
  %945 = vmatpush1.bf16.msra.mxu0 0
  %946 = vmatprep.subr.bf16.mxu0 0
  %947 = vmatpush1.bf16.msra.mxu0 0
  %948 = vmatprep.subr.bf16.mxu0 0
  %949 = vmatpush1.bf16.msra.mxu0 0
  %950 = vmatprep.subr.bf16.mxu0 0
  %951 = vmatpush1.bf16.msra.mxu0 0
  %952 = vmatprep.subr.bf16.mxu0 0
  %953 = vmatpush1.bf16.msra.mxu0 0
  %954 = vmatprep.subr.bf16.mxu0 0
  %955 = vmatpush1.bf16.msra.mxu0 0
  %956 = vmatprep.subr.bf16.mxu0 0
  %957 = vmatpush1.bf16.msra.mxu0 0
  %958 = vmatprep.subr.bf16.mxu0 0
  %959 = vmatpush1.bf16.msra.mxu0 0
  %960 = vmatprep.subr.bf16.mxu0 0
  %961 = vmatpush1.bf16.msra.mxu0 0
  %962 = vmatprep.subr.bf16.mxu0 0
  %963 = vmatpush1.bf16.msra.mxu0 0
  %964 = vmatprep.subr.bf16.mxu0 0
  %965 = vmatpush1.bf16.msra.mxu0 0
  %966 = vmatprep.subr.bf16.mxu0 0
  %967 = vmatpush1.bf16.msra.mxu0 0
  %968 = vmatprep.subr.bf16.mxu0 0
  %969 = vmatpush1.bf16.msra.mxu0 0
  %970 = vmatprep.subr.bf16.mxu0 0
  %971 = vmatpush1.bf16.msra.mxu0 0
  %972 = vmatprep.mubr.bf16.mxu0 0
  %973 = vmatmul.mubr.bf16.gmra.mrb[0].mxu0 %v938
  %v974 = vpop.f32.mrb[0].mxu0
  %v975 = vadd.f32 0.0, %v974
  %v976 = vpop.f32.mrb[0].mxu0
  %v977 = vpop.f32.mrb[0].mxu0
  %v978 = vpop.f32.mrb[0].mxu0
  %979 = vdwg.mxu0
  %980 = vmatprep.subr.bf16.mxu0 0
  %981 = vmatpush1.bf16.msra.mxu0 %v413
  %982 = vmatprep.subr.bf16.mxu0 0
  %983 = vmatpush1.bf16.msra.mxu0 %v414
  %984 = vmatprep.subr.bf16.mxu0 0
  %985 = vmatpush1.bf16.msra.mxu0 0
  %986 = vmatprep.subr.bf16.mxu0 0
  %987 = vmatpush1.bf16.msra.mxu0 0
  %988 = vmatprep.subr.bf16.mxu0 0
  %989 = vmatpush1.bf16.msra.mxu0 0
  %990 = vmatprep.subr.bf16.mxu0 0
  %991 = vmatpush1.bf16.msra.mxu0 0
  %992 = vmatprep.subr.bf16.mxu0 0
  %993 = vmatpush1.bf16.msra.mxu0 0
  %994 = vmatprep.subr.bf16.mxu0 0
  %995 = vmatpush1.bf16.msra.mxu0 0
  %996 = vmatprep.subr.bf16.mxu0 0
  %997 = vmatpush1.bf16.msra.mxu0 0
  %998 = vmatprep.subr.bf16.mxu0 0
  %999 = vmatpush1.bf16.msra.mxu0 0
  %1000 = vmatprep.subr.bf16.mxu0 0
  %1001 = vmatpush1.bf16.msra.mxu0 0
  %1002 = vmatprep.subr.bf16.mxu0 0
  %1003 = vmatpush1.bf16.msra.mxu0 0
  %1004 = vmatprep.subr.bf16.mxu0 0
  %1005 = vmatpush1.bf16.msra.mxu0 0
  %1006 = vmatprep.subr.bf16.mxu0 0
  %1007 = vmatpush1.bf16.msra.mxu0 0
  %1008 = vmatprep.subr.bf16.mxu0 0
  %1009 = vmatpush1.bf16.msra.mxu0 0
  %1010 = vmatprep.subr.bf16.mxu0 0
  %1011 = vmatpush1.bf16.msra.mxu0 0
  %1012 = vmatprep.mubr.bf16.mxu0 0
  %1013 = vmatmul.mubr.bf16.gmra.mrb[0].mxu0 %v869
  %v1014 = vpop.f32.mrb[0].mxu0
  %v1015 = vadd.f32 %v975, %v1014
  %v1016 = vpop.f32.mrb[0].mxu0
  %v1017 = vpop.f32.mrb[0].mxu0
  %v1018 = vpop.f32.mrb[0].mxu0
  %1019 = vdwg.mxu0
  %v1020 = vadd.f32 %v1015, %v197
  %v1021 = vxor.u32 %v1020, 2147483648
  %v1022 = vmul.f32 %v1021, 1.442695
  %v1023 = vpow.pop %v1022
  %v1024 = vadd.f32 %v1023, 1.0
  %v1025 = vrcp.pop %v1024
  %v1026 = vmul.f32 1.0, %v1025
  %v1027 = vtanh.pop %v1020
  %v1028 = vmul.f32 %v1026, %v852
  %1030 = vrot.lane.b32.xlu0 %v1027, 64
  %v1031 = vpop.permute.xlu0 %1030
  %v1033 = vmul.f32 %v1026, %v1031
  %1035 = vrot.lane.b32.xlu0 %v1033, 32
  %v1036 = vpop.permute.xlu0 %1035
  %v1038 = vadd.f32 %v1028, %v1036
  %v1039 = vtanh.pop %v1038
  %1041 = vrot.lane.b32.xlu0 %v1039, 64
  %v1042 = vpop.permute.xlu0 %1041
  %v1044 = vmul.f32 %v1026, %v1042
  %v1045 = vpack.c.bf16 %v1044, %v1044
  %v1047 = vrot.slane %v1045, 4
  %1048 = vrot.lane.b32.xlu0 %v1047, 32
  %v1049 = vpop.permute.xlu0 %1048
  %1051 = vst.msk [vmem:[#allocation2 + $0x8] sm:$0xf0] %vm675, %v1049
  %1053 = vrot.lane.b32.xlu0 %v936, 32
  %v1054 = vpop.permute.xlu0 %1053
  %v1056 = vsel %vm211, %v1054, 0
  %1058 = vmatprep.subr.bf16.mxu0 0
  %1059 = vmatpush1.bf16.msra.mxu0 %v207
  %1060 = vmatprep.subr.bf16.mxu0 0
  %1061 = vmatpush1.bf16.msra.mxu0 %v208
  %1062 = vmatprep.subr.bf16.mxu0 0
  %1063 = vmatpush1.bf16.msra.mxu0 0
  %1064 = vmatprep.subr.bf16.mxu0 0
  %1065 = vmatpush1.bf16.msra.mxu0 0
  %1066 = vmatprep.subr.bf16.mxu0 0
  %1067 = vmatpush1.bf16.msra.mxu0 0
  %1068 = vmatprep.subr.bf16.mxu0 0
  %1069 = vmatpush1.bf16.msra.mxu0 0
  %1070 = vmatprep.subr.bf16.mxu0 0
  %1071 = vmatpush1.bf16.msra.mxu0 0
  %1072 = vmatprep.subr.bf16.mxu0 0
  %1073 = vmatpush1.bf16.msra.mxu0 0
  %1074 = vmatprep.subr.bf16.mxu0 0
  %1075 = vmatpush1.bf16.msra.mxu0 0
  %1076 = vmatprep.subr.bf16.mxu0 0
  %1077 = vmatpush1.bf16.msra.mxu0 0
  %1078 = vmatprep.subr.bf16.mxu0 0
  %1079 = vmatpush1.bf16.msra.mxu0 0
  %1080 = vmatprep.subr.bf16.mxu0 0
  %1081 = vmatpush1.bf16.msra.mxu0 0
  %1082 = vmatprep.subr.bf16.mxu0 0
  %1083 = vmatpush1.bf16.msra.mxu0 0
  %1084 = vmatprep.subr.bf16.mxu0 0
  %1085 = vmatpush1.bf16.msra.mxu0 0
  %1086 = vmatprep.subr.bf16.mxu0 0
  %1087 = vmatpush1.bf16.msra.mxu0 0
  %1088 = vmatprep.subr.bf16.mxu0 0
  %1089 = vmatpush1.bf16.msra.mxu0 0
  %1090 = vmatprep.mubr.bf16.mxu0 0
  %1091 = vmatmul.mubr.bf16.gmra.mrb[0].mxu0 %v1056
  %v1092 = vpop.f32.mrb[0].mxu0
  %v1093 = vadd.f32 0.0, %v1092
  %v1094 = vpop.f32.mrb[0].mxu0
  %v1095 = vpop.f32.mrb[0].mxu0
  %v1096 = vpop.f32.mrb[0].mxu0
  %1097 = vdwg.mxu0
  %v1098 = vadd.f32 %v169, %v1093
  %v1099 = vxor.u32 %v1098, 2147483648
  %v1100 = vmul.f32 %v1099, 1.442695
  %v1101 = vpow.pop %v1100
  %v1102 = vadd.f32 %v1101, 1.0
  %v1103 = vrcp.pop %v1102
  %v1104 = vmul.f32 1.0, %v1103
  %v1105 = vtanh.pop %v1098
  %v1106 = vmul.f32 %v1104, %v929
  %1108 = vrot.lane.b32.xlu0 %v1105, 64
  %v1109 = vpop.permute.xlu0 %1108
  %v1111 = vmul.f32 %v1104, %v1109
  %1113 = vrot.lane.b32.xlu0 %v1111, 32
  %v1114 = vpop.permute.xlu0 %1113
  %v1116 = vadd.f32 %v1106, %v1114
  %v1117 = vtanh.pop %v1116
  %1119 = vrot.lane.b32.xlu0 %v1117, 64
  %v1120 = vpop.permute.xlu0 %1119
  %v1122 = vmul.f32 %v1104, %v1120
  %v1123 = vpack.c.bf16 %v1122, %v1122
  %1124 = vrot.lane.b32.xlu0 %v1045, 32
  %v1125 = vpop.permute.xlu0 %1124
  %v1127 = vsel %vm211, %v1125, 0
  %1129 = vmatprep.subr.bf16.mxu0 0
  %1130 = vmatpush1.bf16.msra.mxu0 %v361
  %1131 = vmatprep.subr.bf16.mxu0 0
  %1132 = vmatpush1.bf16.msra.mxu0 %v362
  %1133 = vmatprep.subr.bf16.mxu0 0
  %1134 = vmatpush1.bf16.msra.mxu0 0
  %1135 = vmatprep.subr.bf16.mxu0 0
  %1136 = vmatpush1.bf16.msra.mxu0 0
  %1137 = vmatprep.subr.bf16.mxu0 0
  %1138 = vmatpush1.bf16.msra.mxu0 0
  %1139 = vmatprep.subr.bf16.mxu0 0
  %1140 = vmatpush1.bf16.msra.mxu0 0
  %1141 = vmatprep.subr.bf16.mxu0 0
  %1142 = vmatpush1.bf16.msra.mxu0 0
  %1143 = vmatprep.subr.bf16.mxu0 0
  %1144 = vmatpush1.bf16.msra.mxu0 0
  %1145 = vmatprep.subr.bf16.mxu0 0
  %1146 = vmatpush1.bf16.msra.mxu0 0
  %1147 = vmatprep.subr.bf16.mxu0 0
  %1148 = vmatpush1.bf16.msra.mxu0 0
  %1149 = vmatprep.subr.bf16.mxu0 0
  %1150 = vmatpush1.bf16.msra.mxu0 0
  %1151 = vmatprep.subr.bf16.mxu0 0
  %1152 = vmatpush1.bf16.msra.mxu0 0
  %1153 = vmatprep.subr.bf16.mxu0 0
  %1154 = vmatpush1.bf16.msra.mxu0 0
  %1155 = vmatprep.subr.bf16.mxu0 0
  %1156 = vmatpush1.bf16.msra.mxu0 0
  %1157 = vmatprep.subr.bf16.mxu0 0
  %1158 = vmatpush1.bf16.msra.mxu0 0
  %1159 = vmatprep.subr.bf16.mxu0 0
  %1160 = vmatpush1.bf16.msra.mxu0 0
  %1161 = vmatprep.mubr.bf16.mxu0 0
  %1162 = vmatmul.mubr.bf16.gmra.mrb[0].mxu0 %v1127
  %v1163 = vpop.f32.mrb[0].mxu0
  %v1164 = vadd.f32 0.0, %v1163
  %v1165 = vpop.f32.mrb[0].mxu0
  %v1166 = vpop.f32.mrb[0].mxu0
  %v1167 = vpop.f32.mrb[0].mxu0
  %1168 = vdwg.mxu0
  %1169 = vmatprep.subr.bf16.mxu0 0
  %1170 = vmatpush1.bf16.msra.mxu0 %v413
  %1171 = vmatprep.subr.bf16.mxu0 0
  %1172 = vmatpush1.bf16.msra.mxu0 %v414
  %1173 = vmatprep.subr.bf16.mxu0 0
  %1174 = vmatpush1.bf16.msra.mxu0 0
  %1175 = vmatprep.subr.bf16.mxu0 0
  %1176 = vmatpush1.bf16.msra.mxu0 0
  %1177 = vmatprep.subr.bf16.mxu0 0
  %1178 = vmatpush1.bf16.msra.mxu0 0
  %1179 = vmatprep.subr.bf16.mxu0 0
  %1180 = vmatpush1.bf16.msra.mxu0 0
  %1181 = vmatprep.subr.bf16.mxu0 0
  %1182 = vmatpush1.bf16.msra.mxu0 0
  %1183 = vmatprep.subr.bf16.mxu0 0
  %1184 = vmatpush1.bf16.msra.mxu0 0
  %1185 = vmatprep.subr.bf16.mxu0 0
  %1186 = vmatpush1.bf16.msra.mxu0 0
  %1187 = vmatprep.subr.bf16.mxu0 0
  %1188 = vmatpush1.bf16.msra.mxu0 0
  %1189 = vmatprep.subr.bf16.mxu0 0
  %1190 = vmatpush1.bf16.msra.mxu0 0
  %1191 = vmatprep.subr.bf16.mxu0 0
  %1192 = vmatpush1.bf16.msra.mxu0 0
  %1193 = vmatprep.subr.bf16.mxu0 0
  %1194 = vmatpush1.bf16.msra.mxu0 0
  %1195 = vmatprep.subr.bf16.mxu0 0
  %1196 = vmatpush1.bf16.msra.mxu0 0
  %1197 = vmatprep.subr.bf16.mxu0 0
  %1198 = vmatpush1.bf16.msra.mxu0 0
  %1199 = vmatprep.subr.bf16.mxu0 0
  %1200 = vmatpush1.bf16.msra.mxu0 0
  %1201 = vmatprep.mubr.bf16.mxu0 0
  %1202 = vmatmul.mubr.bf16.gmra.mrb[0].mxu0 %v1056
  %v1203 = vpop.f32.mrb[0].mxu0
  %v1204 = vadd.f32 %v1164, %v1203
  %v1205 = vpop.f32.mrb[0].mxu0
  %v1206 = vpop.f32.mrb[0].mxu0
  %v1207 = vpop.f32.mrb[0].mxu0
  %1208 = vdwg.mxu0
  %v1209 = vadd.f32 %v1204, %v197
  %v1210 = vxor.u32 %v1209, 2147483648
  %v1211 = vmul.f32 %v1210, 1.442695
  %v1212 = vpow.pop %v1211
  %v1213 = vadd.f32 %v1212, 1.0
  %v1214 = vrcp.pop %v1213
  %v1215 = vmul.f32 1.0, %v1214
  %v1216 = vtanh.pop %v1209
  %v1217 = vmul.f32 %v1215, %v1038
  %1219 = vrot.lane.b32.xlu0 %v1216, 64
  %v1220 = vpop.permute.xlu0 %1219
  %v1222 = vmul.f32 %v1215, %v1220
  %1224 = vrot.lane.b32.xlu0 %v1222, 32
  %v1225 = vpop.permute.xlu0 %1224
  %v1227 = vadd.f32 %v1217, %v1225
  %v1228 = vtanh.pop %v1227
  %1230 = vrot.lane.b32.xlu0 %v1228, 64
  %v1231 = vpop.permute.xlu0 %1230
  %v1233 = vmul.f32 %v1215, %v1231
  %v1234 = vpack.c.bf16 %v1233, %v1233
  %1236 = vrot.lane.b32.xlu0 %v1234, 32
  %v1237 = vpop.permute.xlu0 %1236
  %1239 = vst.msk [vmem:[#allocation2 + $0x10] sm:$0xf] %vm487, %v1237
  %1241 = vrot.lane.b32.xlu0 %v1123, 32
  %v1242 = vpop.permute.xlu0 %1241
  %v1244 = vsel %vm211, %v1242, 0
  %1246 = vmatprep.subr.bf16.mxu0 0
  %1247 = vmatpush1.bf16.msra.mxu0 %v207
  %1248 = vmatprep.subr.bf16.mxu0 0
  %1249 = vmatpush1.bf16.msra.mxu0 %v208
  %1250 = vmatprep.subr.bf16.mxu0 0
  %1251 = vmatpush1.bf16.msra.mxu0 0
  %1252 = vmatprep.subr.bf16.mxu0 0
  %1253 = vmatpush1.bf16.msra.mxu0 0
  %1254 = vmatprep.subr.bf16.mxu0 0
  %1255 = vmatpush1.bf16.msra.mxu0 0
  %1256 = vmatprep.subr.bf16.mxu0 0
  %1257 = vmatpush1.bf16.msra.mxu0 0
  %1258 = vmatprep.subr.bf16.mxu0 0
  %1259 = vmatpush1.bf16.msra.mxu0 0
  %1260 = vmatprep.subr.bf16.mxu0 0
  %1261 = vmatpush1.bf16.msra.mxu0 0
  %1262 = vmatprep.subr.bf16.mxu0 0
  %1263 = vmatpush1.bf16.msra.mxu0 0
  %1264 = vmatprep.subr.bf16.mxu0 0
  %1265 = vmatpush1.bf16.msra.mxu0 0
  %1266 = vmatprep.subr.bf16.mxu0 0
  %1267 = vmatpush1.bf16.msra.mxu0 0
  %1268 = vmatprep.subr.bf16.mxu0 0
  %1269 = vmatpush1.bf16.msra.mxu0 0
  %1270 = vmatprep.subr.bf16.mxu0 0
  %1271 = vmatpush1.bf16.msra.mxu0 0
  %1272 = vmatprep.subr.bf16.mxu0 0
  %1273 = vmatpush1.bf16.msra.mxu0 0
  %1274 = vmatprep.subr.bf16.mxu0 0
  %1275 = vmatpush1.bf16.msra.mxu0 0
  %1276 = vmatprep.subr.bf16.mxu0 0
  %1277 = vmatpush1.bf16.msra.mxu0 0
  %1278 = vmatprep.mubr.bf16.mxu0 0
  %1279 = vmatmul.mubr.bf16.gmra.mrb[0].mxu0 %v1244
  %v1280 = vpop.f32.mrb[0].mxu0
  %v1281 = vadd.f32 0.0, %v1280
  %v1282 = vpop.f32.mrb[0].mxu0
  %v1283 = vpop.f32.mrb[0].mxu0
  %v1284 = vpop.f32.mrb[0].mxu0
  %1285 = vdwg.mxu0
  %v1286 = vadd.f32 %v174, %v1281
  %v1287 = vxor.u32 %v1286, 2147483648
  %v1288 = vmul.f32 %v1287, 1.442695
  %v1289 = vpow.pop %v1288
  %v1290 = vadd.f32 %v1289, 1.0
  %v1291 = vrcp.pop %v1290
  %v1292 = vmul.f32 1.0, %v1291
  %v1293 = vtanh.pop %v1286
  %v1294 = vmul.f32 %v1292, %v1116
  %1296 = vrot.lane.b32.xlu0 %v1293, 64
  %v1297 = vpop.permute.xlu0 %1296
  %v1299 = vmul.f32 %v1292, %v1297
  %1301 = vrot.lane.b32.xlu0 %v1299, 32
  %v1302 = vpop.permute.xlu0 %1301
  %v1304 = vadd.f32 %v1294, %v1302
  %v1305 = vtanh.pop %v1304
  %1307 = vrot.lane.b32.xlu0 %v1305, 64
  %v1308 = vpop.permute.xlu0 %1307
  %v1310 = vmul.f32 %v1292, %v1308
  %v1311 = vpack.c.bf16 %v1310, %v1310
  %v1313 = vsel %vm211, %v1237, 0
  %1315 = vmatprep.subr.bf16.mxu0 0
  %1316 = vmatpush1.bf16.msra.mxu0 %v361
  %1317 = vmatprep.subr.bf16.mxu0 0
  %1318 = vmatpush1.bf16.msra.mxu0 %v362
  %1319 = vmatprep.subr.bf16.mxu0 0
  %1320 = vmatpush1.bf16.msra.mxu0 0
  %1321 = vmatprep.subr.bf16.mxu0 0
  %1322 = vmatpush1.bf16.msra.mxu0 0
  %1323 = vmatprep.subr.bf16.mxu0 0
  %1324 = vmatpush1.bf16.msra.mxu0 0
  %1325 = vmatprep.subr.bf16.mxu0 0
  %1326 = vmatpush1.bf16.msra.mxu0 0
  %1327 = vmatprep.subr.bf16.mxu0 0
  %1328 = vmatpush1.bf16.msra.mxu0 0
  %1329 = vmatprep.subr.bf16.mxu0 0
  %1330 = vmatpush1.bf16.msra.mxu0 0
  %1331 = vmatprep.subr.bf16.mxu0 0
  %1332 = vmatpush1.bf16.msra.mxu0 0
  %1333 = vmatprep.subr.bf16.mxu0 0
  %1334 = vmatpush1.bf16.msra.mxu0 0
  %1335 = vmatprep.subr.bf16.mxu0 0
  %1336 = vmatpush1.bf16.msra.mxu0 0
  %1337 = vmatprep.subr.bf16.mxu0 0
  %1338 = vmatpush1.bf16.msra.mxu0 0
  %1339 = vmatprep.subr.bf16.mxu0 0
  %1340 = vmatpush1.bf16.msra.mxu0 0
  %1341 = vmatprep.subr.bf16.mxu0 0
  %1342 = vmatpush1.bf16.msra.mxu0 0
  %1343 = vmatprep.subr.bf16.mxu0 0
  %1344 = vmatpush1.bf16.msra.mxu0 0
  %1345 = vmatprep.subr.bf16.mxu0 0
  %1346 = vmatpush1.bf16.msra.mxu0 0
  %1347 = vmatprep.mubr.bf16.mxu0 0
  %1348 = vmatmul.mubr.bf16.gmra.mrb[0].mxu0 %v1313
  %v1349 = vpop.f32.mrb[0].mxu0
  %v1350 = vadd.f32 0.0, %v1349
  %v1351 = vpop.f32.mrb[0].mxu0
  %v1352 = vpop.f32.mrb[0].mxu0
  %v1353 = vpop.f32.mrb[0].mxu0
  %1354 = vdwg.mxu0
  %1355 = vmatprep.subr.bf16.mxu0 0
  %1356 = vmatpush1.bf16.msra.mxu0 %v413
  %1357 = vmatprep.subr.bf16.mxu0 0
  %1358 = vmatpush1.bf16.msra.mxu0 %v414
  %1359 = vmatprep.subr.bf16.mxu0 0
  %1360 = vmatpush1.bf16.msra.mxu0 0
  %1361 = vmatprep.subr.bf16.mxu0 0
  %1362 = vmatpush1.bf16.msra.mxu0 0
  %1363 = vmatprep.subr.bf16.mxu0 0
  %1364 = vmatpush1.bf16.msra.mxu0 0
  %1365 = vmatprep.subr.bf16.mxu0 0
  %1366 = vmatpush1.bf16.msra.mxu0 0
  %1367 = vmatprep.subr.bf16.mxu0 0
  %1368 = vmatpush1.bf16.msra.mxu0 0
  %1369 = vmatprep.subr.bf16.mxu0 0
  %1370 = vmatpush1.bf16.msra.mxu0 0
  %1371 = vmatprep.subr.bf16.mxu0 0
  %1372 = vmatpush1.bf16.msra.mxu0 0
  %1373 = vmatprep.subr.bf16.mxu0 0
  %1374 = vmatpush1.bf16.msra.mxu0 0
  %1375 = vmatprep.subr.bf16.mxu0 0
  %1376 = vmatpush1.bf16.msra.mxu0 0
  %1377 = vmatprep.subr.bf16.mxu0 0
  %1378 = vmatpush1.bf16.msra.mxu0 0
  %1379 = vmatprep.subr.bf16.mxu0 0
  %1380 = vmatpush1.bf16.msra.mxu0 0
  %1381 = vmatprep.subr.bf16.mxu0 0
  %1382 = vmatpush1.bf16.msra.mxu0 0
  %1383 = vmatprep.subr.bf16.mxu0 0
  %1384 = vmatpush1.bf16.msra.mxu0 0
  %1385 = vmatprep.subr.bf16.mxu0 0
  %1386 = vmatpush1.bf16.msra.mxu0 0
  %1387 = vmatprep.mubr.bf16.mxu0 0
  %1388 = vmatmul.mubr.bf16.gmra.mrb[0].mxu0 %v1244
  %v1389 = vpop.f32.mrb[0].mxu0
  %v1390 = vadd.f32 %v1350, %v1389
  %v1391 = vpop.f32.mrb[0].mxu0
  %v1392 = vpop.f32.mrb[0].mxu0
  %v1393 = vpop.f32.mrb[0].mxu0
  %1394 = vdwg.mxu0
  %v1395 = vadd.f32 %v1390, %v197
  %v1396 = vxor.u32 %v1395, 2147483648
  %v1397 = vmul.f32 %v1396, 1.442695
  %v1398 = vpow.pop %v1397
  %v1399 = vadd.f32 %v1398, 1.0
  %v1400 = vrcp.pop %v1399
  %v1401 = vmul.f32 1.0, %v1400
  %v1402 = vtanh.pop %v1395
  %v1403 = vmul.f32 %v1401, %v1227
  %1405 = vrot.lane.b32.xlu0 %v1402, 64
  %v1406 = vpop.permute.xlu0 %1405
  %v1408 = vmul.f32 %v1401, %v1406
  %1410 = vrot.lane.b32.xlu0 %v1408, 32
  %v1411 = vpop.permute.xlu0 %1410
  %v1413 = vadd.f32 %v1403, %v1411
  %v1414 = vtanh.pop %v1413
  %1416 = vrot.lane.b32.xlu0 %v1414, 64
  %v1417 = vpop.permute.xlu0 %1416
  %v1419 = vmul.f32 %v1401, %v1417
  %v1420 = vpack.c.bf16 %v1419, %v1419
  %v1422 = vrot.slane %v1420, 4
  %1423 = vrot.lane.b32.xlu0 %v1422, 32
  %v1424 = vpop.permute.xlu0 %1423
  %1426 = vst.msk [vmem:[#allocation2 + $0x10] sm:$0xf0] %vm675, %v1424
  %1428 = vrot.lane.b32.xlu0 %v1311, 32
  %v1429 = vpop.permute.xlu0 %1428
  %v1431 = vsel %vm211, %v1429, 0
  %1433 = vmatprep.subr.bf16.mxu0 0
  %1434 = vmatpush1.bf16.msra.mxu0 %v207
  %1435 = vmatprep.subr.bf16.mxu0 0
  %1436 = vmatpush1.bf16.msra.mxu0 %v208
  %1437 = vmatprep.subr.bf16.mxu0 0
  %1438 = vmatpush1.bf16.msra.mxu0 0
  %1439 = vmatprep.subr.bf16.mxu0 0
  %1440 = vmatpush1.bf16.msra.mxu0 0
  %1441 = vmatprep.subr.bf16.mxu0 0
  %1442 = vmatpush1.bf16.msra.mxu0 0
  %1443 = vmatprep.subr.bf16.mxu0 0
  %1444 = vmatpush1.bf16.msra.mxu0 0
  %1445 = vmatprep.subr.bf16.mxu0 0
  %1446 = vmatpush1.bf16.msra.mxu0 0
  %1447 = vmatprep.subr.bf16.mxu0 0
  %1448 = vmatpush1.bf16.msra.mxu0 0
  %1449 = vmatprep.subr.bf16.mxu0 0
  %1450 = vmatpush1.bf16.msra.mxu0 0
  %1451 = vmatprep.subr.bf16.mxu0 0
  %1452 = vmatpush1.bf16.msra.mxu0 0
  %1453 = vmatprep.subr.bf16.mxu0 0
  %1454 = vmatpush1.bf16.msra.mxu0 0
  %1455 = vmatprep.subr.bf16.mxu0 0
  %1456 = vmatpush1.bf16.msra.mxu0 0
  %1457 = vmatprep.subr.bf16.mxu0 0
  %1458 = vmatpush1.bf16.msra.mxu0 0
  %1459 = vmatprep.subr.bf16.mxu0 0
  %1460 = vmatpush1.bf16.msra.mxu0 0
  %1461 = vmatprep.subr.bf16.mxu0 0
  %1462 = vmatpush1.bf16.msra.mxu0 0
  %1463 = vmatprep.subr.bf16.mxu0 0
  %1464 = vmatpush1.bf16.msra.mxu0 0
  %1465 = vmatprep.mubr.bf16.mxu0 0
  %1466 = vmatmul.mubr.bf16.gmra.mrb[0].mxu0 %v1431
  %v1467 = vpop.f32.mrb[0].mxu0
  %v1468 = vadd.f32 0.0, %v1467
  %v1469 = vpop.f32.mrb[0].mxu0
  %v1470 = vpop.f32.mrb[0].mxu0
  %v1471 = vpop.f32.mrb[0].mxu0
  %1472 = vdwg.mxu0
  %v1473 = vadd.f32 %v177, %v1468
  %v1474 = vxor.u32 %v1473, 2147483648
  %v1475 = vmul.f32 %v1474, 1.442695
  %v1476 = vpow.pop %v1475
  %v1477 = vadd.f32 %v1476, 1.0
  %v1478 = vrcp.pop %v1477
  %v1479 = vmul.f32 1.0, %v1478
  %v1480 = vtanh.pop %v1473
  %v1481 = vmul.f32 %v1479, %v1304
  %1483 = vrot.lane.b32.xlu0 %v1480, 64
  %v1484 = vpop.permute.xlu0 %1483
  %v1486 = vmul.f32 %v1479, %v1484
  %1488 = vrot.lane.b32.xlu0 %v1486, 32
  %v1489 = vpop.permute.xlu0 %1488
  %v1491 = vadd.f32 %v1481, %v1489
  %v1492 = vtanh.pop %v1491
  %1494 = vrot.lane.b32.xlu0 %v1492, 64
  %v1495 = vpop.permute.xlu0 %1494
  %v1497 = vmul.f32 %v1479, %v1495
  %v1498 = vpack.c.bf16 %v1497, %v1497
  %1499 = vrot.lane.b32.xlu0 %v1420, 32
  %v1500 = vpop.permute.xlu0 %1499
  %v1502 = vsel %vm211, %v1500, 0
  %1504 = vmatprep.subr.bf16.mxu0 0
  %1505 = vmatpush1.bf16.msra.mxu0 %v361
  %1506 = vmatprep.subr.bf16.mxu0 0
  %1507 = vmatpush1.bf16.msra.mxu0 %v362
  %1508 = vmatprep.subr.bf16.mxu0 0
  %1509 = vmatpush1.bf16.msra.mxu0 0
  %1510 = vmatprep.subr.bf16.mxu0 0
  %1511 = vmatpush1.bf16.msra.mxu0 0
  %1512 = vmatprep.subr.bf16.mxu0 0
  %1513 = vmatpush1.bf16.msra.mxu0 0
  %1514 = vmatprep.subr.bf16.mxu0 0
  %1515 = vmatpush1.bf16.msra.mxu0 0
  %1516 = vmatprep.subr.bf16.mxu0 0
  %1517 = vmatpush1.bf16.msra.mxu0 0
  %1518 = vmatprep.subr.bf16.mxu0 0
  %1519 = vmatpush1.bf16.msra.mxu0 0
  %1520 = vmatprep.subr.bf16.mxu0 0
  %1521 = vmatpush1.bf16.msra.mxu0 0
  %1522 = vmatprep.subr.bf16.mxu0 0
  %1523 = vmatpush1.bf16.msra.mxu0 0
  %1524 = vmatprep.subr.bf16.mxu0 0
  %1525 = vmatpush1.bf16.msra.mxu0 0
  %1526 = vmatprep.subr.bf16.mxu0 0
  %1527 = vmatpush1.bf16.msra.mxu0 0
  %1528 = vmatprep.subr.bf16.mxu0 0
  %1529 = vmatpush1.bf16.msra.mxu0 0
  %1530 = vmatprep.subr.bf16.mxu0 0
  %1531 = vmatpush1.bf16.msra.mxu0 0
  %1532 = vmatprep.subr.bf16.mxu0 0
  %1533 = vmatpush1.bf16.msra.mxu0 0
  %1534 = vmatprep.subr.bf16.mxu0 0
  %1535 = vmatpush1.bf16.msra.mxu0 0
  %1536 = vmatprep.mubr.bf16.mxu0 0
  %1537 = vmatmul.mubr.bf16.gmra.mrb[0].mxu0 %v1502
  %v1538 = vpop.f32.mrb[0].mxu0
  %v1539 = vadd.f32 0.0, %v1538
  %v1540 = vpop.f32.mrb[0].mxu0
  %v1541 = vpop.f32.mrb[0].mxu0
  %v1542 = vpop.f32.mrb[0].mxu0
  %1543 = vdwg.mxu0
  %1544 = vmatprep.subr.bf16.mxu0 0
  %1545 = vmatpush1.bf16.msra.mxu0 %v413
  %1546 = vmatprep.subr.bf16.mxu0 0
  %1547 = vmatpush1.bf16.msra.mxu0 %v414
  %1548 = vmatprep.subr.bf16.mxu0 0
  %1549 = vmatpush1.bf16.msra.mxu0 0
  %1550 = vmatprep.subr.bf16.mxu0 0
  %1551 = vmatpush1.bf16.msra.mxu0 0
  %1552 = vmatprep.subr.bf16.mxu0 0
  %1553 = vmatpush1.bf16.msra.mxu0 0
  %1554 = vmatprep.subr.bf16.mxu0 0
  %1555 = vmatpush1.bf16.msra.mxu0 0
  %1556 = vmatprep.subr.bf16.mxu0 0
  %1557 = vmatpush1.bf16.msra.mxu0 0
  %1558 = vmatprep.subr.bf16.mxu0 0
  %1559 = vmatpush1.bf16.msra.mxu0 0
  %1560 = vmatprep.subr.bf16.mxu0 0
  %1561 = vmatpush1.bf16.msra.mxu0 0
  %1562 = vmatprep.subr.bf16.mxu0 0
  %1563 = vmatpush1.bf16.msra.mxu0 0
  %1564 = vmatprep.subr.bf16.mxu0 0
  %1565 = vmatpush1.bf16.msra.mxu0 0
  %1566 = vmatprep.subr.bf16.mxu0 0
  %1567 = vmatpush1.bf16.msra.mxu0 0
  %1568 = vmatprep.subr.bf16.mxu0 0
  %1569 = vmatpush1.bf16.msra.mxu0 0
  %1570 = vmatprep.subr.bf16.mxu0 0
  %1571 = vmatpush1.bf16.msra.mxu0 0
  %1572 = vmatprep.subr.bf16.mxu0 0
  %1573 = vmatpush1.bf16.msra.mxu0 0
  %1574 = vmatprep.subr.bf16.mxu0 0
  %1575 = vmatpush1.bf16.msra.mxu0 0
  %1576 = vmatprep.mubr.bf16.mxu0 0
  %1577 = vmatmul.mubr.bf16.gmra.mrb[0].mxu0 %v1431
  %v1578 = vpop.f32.mrb[0].mxu0
  %v1579 = vadd.f32 %v1539, %v1578
  %v1580 = vpop.f32.mrb[0].mxu0
  %v1581 = vpop.f32.mrb[0].mxu0
  %v1582 = vpop.f32.mrb[0].mxu0
  %1583 = vdwg.mxu0
  %v1584 = vadd.f32 %v1579, %v197
  %v1585 = vxor.u32 %v1584, 2147483648
  %v1586 = vmul.f32 %v1585, 1.442695
  %v1587 = vpow.pop %v1586
  %v1588 = vadd.f32 %v1587, 1.0
  %v1589 = vrcp.pop %v1588
  %v1590 = vmul.f32 1.0, %v1589
  %v1591 = vtanh.pop %v1584
  %v1592 = vmul.f32 %v1590, %v1413
  %1594 = vrot.lane.b32.xlu0 %v1591, 64
  %v1595 = vpop.permute.xlu0 %1594
  %v1597 = vmul.f32 %v1590, %v1595
  %1599 = vrot.lane.b32.xlu0 %v1597, 32
  %v1600 = vpop.permute.xlu0 %1599
  %v1602 = vadd.f32 %v1592, %v1600
  %v1603 = vtanh.pop %v1602
  %1605 = vrot.lane.b32.xlu0 %v1603, 64
  %v1606 = vpop.permute.xlu0 %1605
  %v1608 = vmul.f32 %v1590, %v1606
  %v1609 = vpack.c.bf16 %v1608, %v1608
  %1611 = vrot.lane.b32.xlu0 %v1609, 32
  %v1612 = vpop.permute.xlu0 %1611
  %1614 = vst.msk [vmem:[#allocation2 + $0x18] sm:$0xf] %vm487, %v1612
  %v1616 = vsel %vm211, %v1612, 0
  %1618 = vmatprep.subr.bf16.mxu0 0
  %1619 = vmatpush1.bf16.msra.mxu0 %v361
  %1620 = vmatprep.subr.bf16.mxu0 0
  %1621 = vmatpush1.bf16.msra.mxu0 %v362
  %1622 = vmatprep.subr.bf16.mxu0 0
  %1623 = vmatpush1.bf16.msra.mxu0 0
  %1624 = vmatprep.subr.bf16.mxu0 0
  %1625 = vmatpush1.bf16.msra.mxu0 0
  %1626 = vmatprep.subr.bf16.mxu0 0
  %1627 = vmatpush1.bf16.msra.mxu0 0
  %1628 = vmatprep.subr.bf16.mxu0 0
  %1629 = vmatpush1.bf16.msra.mxu0 0
  %1630 = vmatprep.subr.bf16.mxu0 0
  %1631 = vmatpush1.bf16.msra.mxu0 0
  %1632 = vmatprep.subr.bf16.mxu0 0
  %1633 = vmatpush1.bf16.msra.mxu0 0
  %1634 = vmatprep.subr.bf16.mxu0 0
  %1635 = vmatpush1.bf16.msra.mxu0 0
  %1636 = vmatprep.subr.bf16.mxu0 0
  %1637 = vmatpush1.bf16.msra.mxu0 0
  %1638 = vmatprep.subr.bf16.mxu0 0
  %1639 = vmatpush1.bf16.msra.mxu0 0
  %1640 = vmatprep.subr.bf16.mxu0 0
  %1641 = vmatpush1.bf16.msra.mxu0 0
  %1642 = vmatprep.subr.bf16.mxu0 0
  %1643 = vmatpush1.bf16.msra.mxu0 0
  %1644 = vmatprep.subr.bf16.mxu0 0
  %1645 = vmatpush1.bf16.msra.mxu0 0
  %1646 = vmatprep.subr.bf16.mxu0 0
  %1647 = vmatpush1.bf16.msra.mxu0 0
  %1648 = vmatprep.subr.bf16.mxu0 0
  %1649 = vmatpush1.bf16.msra.mxu0 0
  %1650 = vmatprep.mubr.bf16.mxu0 0
  %1651 = vmatmul.mubr.bf16.gmra.mrb[0].mxu0 %v1616
  %v1652 = vpop.f32.mrb[0].mxu0
  %v1653 = vadd.f32 0.0, %v1652
  %v1654 = vpop.f32.mrb[0].mxu0
  %v1655 = vpop.f32.mrb[0].mxu0
  %v1656 = vpop.f32.mrb[0].mxu0
  %1657 = vdwg.mxu0
  %1659 = vrot.lane.b32.xlu0 %v1498, 32
  %v1660 = vpop.permute.xlu0 %1659
  %v1662 = vsel %vm211, %v1660, 0
  %1664 = vmatprep.subr.bf16.mxu0 0
  %1665 = vmatpush1.bf16.msra.mxu0 %v413
  %1666 = vmatprep.subr.bf16.mxu0 0
  %1667 = vmatpush1.bf16.msra.mxu0 %v414
  %1668 = vmatprep.subr.bf16.mxu0 0
  %1669 = vmatpush1.bf16.msra.mxu0 0
  %1670 = vmatprep.subr.bf16.mxu0 0
  %1671 = vmatpush1.bf16.msra.mxu0 0
  %1672 = vmatprep.subr.bf16.mxu0 0
  %1673 = vmatpush1.bf16.msra.mxu0 0
  %1674 = vmatprep.subr.bf16.mxu0 0
  %1675 = vmatpush1.bf16.msra.mxu0 0
  %1676 = vmatprep.subr.bf16.mxu0 0
  %1677 = vmatpush1.bf16.msra.mxu0 0
  %1678 = vmatprep.subr.bf16.mxu0 0
  %1679 = vmatpush1.bf16.msra.mxu0 0
  %1680 = vmatprep.subr.bf16.mxu0 0
  %1681 = vmatpush1.bf16.msra.mxu0 0
  %1682 = vmatprep.subr.bf16.mxu0 0
  %1683 = vmatpush1.bf16.msra.mxu0 0
  %1684 = vmatprep.subr.bf16.mxu0 0
  %1685 = vmatpush1.bf16.msra.mxu0 0
  %1686 = vmatprep.subr.bf16.mxu0 0
  %1687 = vmatpush1.bf16.msra.mxu0 0
  %1688 = vmatprep.subr.bf16.mxu0 0
  %1689 = vmatpush1.bf16.msra.mxu0 0
  %1690 = vmatprep.subr.bf16.mxu0 0
  %1691 = vmatpush1.bf16.msra.mxu0 0
  %1692 = vmatprep.subr.bf16.mxu0 0
  %1693 = vmatpush1.bf16.msra.mxu0 0
  %1694 = vmatprep.subr.bf16.mxu0 0
  %1695 = vmatpush1.bf16.msra.mxu0 0
  %1696 = vmatprep.mubr.bf16.mxu0 0
  %1697 = vmatmul.mubr.bf16.gmra.mrb[0].mxu0 %v1662
  %v1698 = vpop.f32.mrb[0].mxu0
  %v1699 = vadd.f32 %v1653, %v1698
  %v1700 = vpop.f32.mrb[0].mxu0
  %v1701 = vpop.f32.mrb[0].mxu0
  %v1702 = vpop.f32.mrb[0].mxu0
  %1703 = vdwg.mxu0
  %v1704 = vadd.f32 %v1699, %v197
  %v1705 = vxor.u32 %v1704, 2147483648
  %v1706 = vmul.f32 %v1705, 1.442695
  %v1707 = vpow.pop %v1706
  %v1708 = vadd.f32 %v1707, 1.0
  %v1709 = vrcp.pop %v1708
  %v1710 = vmul.f32 1.0, %v1709
  %v1711 = vtanh.pop %v1704
  %v1712 = vmul.f32 %v1710, %v1602
  %1714 = vrot.lane.b32.xlu0 %v1711, 64
  %v1715 = vpop.permute.xlu0 %1714
  %v1717 = vmul.f32 %v1710, %v1715
  %1719 = vrot.lane.b32.xlu0 %v1717, 32
  %v1720 = vpop.permute.xlu0 %1719
  %v1722 = vadd.f32 %v1712, %v1720
  %v1723 = vtanh.pop %v1722
  %1725 = vrot.lane.b32.xlu0 %v1723, 64
  %v1726 = vpop.permute.xlu0 %1725
  %v1728 = vmul.f32 %v1710, %v1726
  %v1729 = vpack.c.bf16 %v1728, %v1728
  %v1731 = vrot.slane %v1729, 4
  %1732 = vrot.lane.b32.xlu0 %v1731, 32
  %v1733 = vpop.permute.xlu0 %1732
  %1735 = vst.msk [vmem:[#allocation2 + $0x18] sm:$0xf0] %vm675, %v1733
  %v1736 = vld [vmem:[#allocation2] sm:$0xff]
  %v1737 = vld [vmem:[#allocation2 + $0x8] sm:$0xff]
  %v1738 = vld [vmem:[#allocation2 + $0x10] sm:$0xff]
  %v1739 = vld [vmem:[#allocation2 + $0x18] sm:$0xff]
  %v1740 = vld [vmem:[%s7] sm:$0xf]
  %v1741 = vld [vmem:[%s7 + $0x4] sm:$0xf]
  %v1742 = vld [vmem:[%s7 + $0x8] sm:$0xf]
  %v1743 = vld [vmem:[%s7 + $0xc] sm:$0xf]
  %v1744 = vld [vmem:[%s8] sm:$0x1]
  %v1746 = vlaneseq
  %v1747 = vshrl.u32 %v1746, 7
  %v1748 = vsub.s32 0, %v1747
  %v1749 = vrot.slane %v1744, %v1748
  %v1755 = vunpack.c.l.b16 %v1740
  %v1756 = vunpack.c.l.b16 %v1741
  %v1757 = vunpack.c.l.b16 %v1742
  %v1758 = vunpack.c.l.b16 %v1743
  %v1759 = vpack.c.b16 %v1756, %v1755
  %v1760 = vpack.c.b16 %v1758, %v1757
  %v1764 = vsel %vm211, %v1736, 0
  %v1767 = vsel %vm211, %v1737, 0
  %v1770 = vsel %vm211, %v1738, 0
  %v1773 = vsel %vm211, %v1739, 0
  %1775 = vmatprep.subr.bf16.mxu0 0
  %1776 = vmatpush1.bf16.msra.mxu0 %v1759
  %1777 = vmatprep.subr.bf16.mxu0 0
  %1778 = vmatpush1.bf16.msra.mxu0 %v1760
  %1779 = vmatprep.subr.bf16.mxu0 0
  %1780 = vmatpush1.bf16.msra.mxu0 0
  %1781 = vmatprep.subr.bf16.mxu0 0
  %1782 = vmatpush1.bf16.msra.mxu0 0
  %1783 = vmatprep.subr.bf16.mxu0 0
  %1784 = vmatpush1.bf16.msra.mxu0 0
  %1785 = vmatprep.subr.bf16.mxu0 0
  %1786 = vmatpush1.bf16.msra.mxu0 0
  %1787 = vmatprep.subr.bf16.mxu0 0
  %1788 = vmatpush1.bf16.msra.mxu0 0
  %1789 = vmatprep.subr.bf16.mxu0 0
  %1790 = vmatpush1.bf16.msra.mxu0 0
  %1791 = vmatprep.subr.bf16.mxu0 0
  %1792 = vmatpush1.bf16.msra.mxu0 0
  %1793 = vmatprep.subr.bf16.mxu0 0
  %1794 = vmatpush1.bf16.msra.mxu0 0
  %1795 = vmatprep.subr.bf16.mxu0 0
  %1796 = vmatpush1.bf16.msra.mxu0 0
  %1797 = vmatprep.subr.bf16.mxu0 0
  %1798 = vmatpush1.bf16.msra.mxu0 0
  %1799 = vmatprep.subr.bf16.mxu0 0
  %1800 = vmatpush1.bf16.msra.mxu0 0
  %1801 = vmatprep.subr.bf16.mxu0 0
  %1802 = vmatpush1.bf16.msra.mxu0 0
  %1803 = vmatprep.subr.bf16.mxu0 0
  %1804 = vmatpush1.bf16.msra.mxu0 0
  %1805 = vmatprep.subr.bf16.mxu0 0
  %1806 = vmatpush1.bf16.msra.mxu0 0
  %1807 = vmatprep.mubr.bf16.mxu0 0
  %1808 = vmatmul.mubr.bf16.gmra.mrb[0].mxu0 %v1764
  %v1809 = vpop.f32.mrb[0].mxu0
  %v1810 = vadd.f32 %v1749, %v1809
  %v1811 = vpop.f32.mrb[0].mxu0
  %v1812 = vpop.f32.mrb[0].mxu0
  %v1813 = vadd.f32 %v1749, %v1812
  %v1814 = vpop.f32.mrb[0].mxu0
  %1815 = vmatprep.mubr.bf16.mxu0 0
  %1816 = vmatmul.mubr.bf16.gmra.mrb[0].mxu0 %v1767
  %v1817 = vpop.f32.mrb[0].mxu0
  %v1818 = vadd.f32 %v1749, %v1817
  %v1819 = vpop.f32.mrb[0].mxu0
  %v1820 = vpop.f32.mrb[0].mxu0
  %v1821 = vadd.f32 %v1749, %v1820
  %v1822 = vpop.f32.mrb[0].mxu0
  %1823 = vmatprep.mubr.bf16.mxu0 0
  %1824 = vmatmul.mubr.bf16.gmra.mrb[0].mxu0 %v1770
  %v1825 = vpop.f32.mrb[0].mxu0
  %v1826 = vadd.f32 %v1749, %v1825
  %v1827 = vpop.f32.mrb[0].mxu0
  %v1828 = vpop.f32.mrb[0].mxu0
  %v1829 = vadd.f32 %v1749, %v1828
  %v1830 = vpop.f32.mrb[0].mxu0
  %1831 = vmatprep.mubr.bf16.mxu0 0
  %1832 = vmatmul.mubr.bf16.gmra.mrb[0].mxu0 %v1773
  %v1833 = vpop.f32.mrb[0].mxu0
  %v1834 = vadd.f32 %v1749, %v1833
  %v1835 = vpop.f32.mrb[0].mxu0
  %v1836 = vpop.f32.mrb[0].mxu0
  %v1837 = vadd.f32 %v1749, %v1836
  %v1838 = vpop.f32.mrb[0].mxu0
  %1839 = vdwg.mxu0
  %1840 = vst [vmem:[%s9] sm:$0xff] %v1810
  %1841 = vst [vmem:[%s9 + $0x8] sm:$0xff] %v1813
  %1842 = vst [vmem:[%s9 + $0x10] sm:$0xff] %v1818
  %1843 = vst [vmem:[%s9 + $0x18] sm:$0xff] %v1821
  %1844 = vst [vmem:[%s9 + $0x20] sm:$0xff] %v1826
  %1845 = vst [vmem:[%s9 + $0x28] sm:$0xff] %v1829
  %1846 = vst [vmem:[%s9 + $0x30] sm:$0xff] %v1834
  %1847 = vst [vmem:[%s9 + $0x38] sm:$0xff] %v1837
  // Predicated region
  $region38: #{_lambda_.1} parent=0 // pred_check
    _
  $region39: #{_lambda_.1} parent=0 // pred_check_branch
    %1849 = sbr.rel (0) target = $region41
  $region40: #{_lambda_.1} parent=0 // pred_region
    _
  $region41: #{_lambda_.1} parent=0 // pred_fallthru
    _
  // Predicated region
  $region42: #{_lambda_.1} parent=0 // pred_check
    _
  $region43: #{_lambda_.1} parent=0 // pred_check_branch
    %1851 = sbr.rel (0) target = $region45
  $region44: #{_lambda_.1} parent=0 // pred_region
    _
  $region45: #{_lambda_.1} parent=0 // pred_fallthru
    _

</llo_original>
